<compile_context>
chip_gen: v7x
topology: tpu7x:2x2x1
jax: 0.10.0
libtpu: 0.0.40
codegen_flags: <defaults>
</compile_context>

<pallas_src>
import numpy as np
import jax
import jax.numpy as jnp
from jax.experimental import pallas as pl
from jax.experimental.pallas import tpu as pltpu

_BN_EPS = 1e-5


# ------------------------------ fused kernel --------------------------------
def se_conv_kernel(x_ref, se_a_ref, se_b_ref, wb1_ref, t1_ref, wb2_ref, t2_ref,
                   o_ref):
    # x_ref : (1, H, W*C)       lane-dense activation (channel-minor per pixel)
    # se_a  : (W*C, Cr)         avg-pool + SE fc1 folded (already / (H*W))
    # se_b  : (Cr, W*C)         SE fc2 with channel->lane broadcast folded in
    # wb*   : (3, W*Cin, W*Cout) block-banded 3x3 conv weights (BN scale folded)
    # t*    : (1, W*Cout)       folded bias + BN shift, tiled along W
    x2d = x_ref[0].astype(jnp.float32)                          # (H, W*C)
    H = x2d.shape[0]

    # ---- SE block: global avg pool + fc1/ReLU + fc2/sigmoid, all lane-dense ----
    colsum = jnp.sum(x2d, axis=0, keepdims=True)                # (1, W*C)
    h = jnp.maximum(
        jnp.dot(colsum, se_a_ref[...], preferred_element_type=jnp.float32), 0.0)
    s_tiled = jax.nn.sigmoid(
        jnp.dot(h, se_b_ref[...], preferred_element_type=jnp.float32))  # (1, W*C)
    xs = x2d * s_tiled                                          # SE rescale, stays in VMEM

    # ---- exact 0/1 row-shift matrices (vertical SAME padding), built once ----
    r = jax.lax.broadcasted_iota(jnp.int32, (H, H), 0)
    c = jax.lax.broadcasted_iota(jnp.int32, (H, H), 1)
    shift_dn = (r == c + 1).astype(jnp.float32)   # row h <- input row h-1 (row 0 -> zeros)
    shift_up = (c == r + 1).astype(jnp.float32)   # row h <- input row h+1 (last row -> zeros)

    # ---- 3x3 conv + folded BN + ReLU as 3 banded fat-K matmuls ----
    def conv_bn_relu(xin, wb_ref, t_ref):
        x_dn = jnp.dot(shift_dn, xin, preferred_element_type=jnp.float32)
        x_up = jnp.dot(shift_up, xin, preferred_element_type=jnp.float32)
        acc = jnp.dot(x_dn, wb_ref[0], preferred_element_type=jnp.float32)
        acc = acc + jnp.dot(xin, wb_ref[1], preferred_element_type=jnp.float32)
        acc = acc + jnp.dot(x_up, wb_ref[2], preferred_element_type=jnp.float32)
        return jnp.maximum(acc + t_ref[...], 0.0)

    h1 = conv_bn_relu(xs, wb1_ref, t1_ref)                      # (H, W*C)
    out = conv_bn_relu(h1, wb2_ref, t2_ref)                     # (H, W*Ch)
    o_ref[0] = out.astype(o_ref.dtype)                          # lane-dense store


# --------------------------- host-side weight prep ---------------------------
def _fold_bn(w, b, gamma, beta, mean, var):
    scale = gamma / jnp.sqrt(var + _BN_EPS)            # (Cout,)
    return w * scale, (b - mean) * scale + beta        # folded weight, folded shift


def _make_banded(wf, W):
    """HWIO (3,3,Cin,Cout) weights -> (3, W*Cin, W*Cout) block-banded matrices.

    m[kh][u*Cin+ci, w*Cout+co] = wf[kh, u-w+1, ci, co]; horizontal SAME padding is
    handled by omitting out-of-range taps.
    """
    wf = np.asarray(wf)
    _, _, Cin, Cout = wf.shape
    m = np.zeros((3, W * Cin, W * Cout), np.float32)
    for kh in range(3):
        for w in range(W):
            for kw in range(3):
                u = w + kw - 1
                if 0 <= u < W:
                    m[kh, u * Cin:(u + 1) * Cin, w * Cout:(w + 1) * Cout] = wf[kh, kw]
    return jnp.asarray(m)


def prepare_params(p, H, W):
    """One-time host folding: BN into conv weights, pool/broadcast into SE FCs."""
    C = p['se_w1'].shape[0]
    Ch = p['conv2_w'].shape[-1]
    se_a = jnp.tile(p['se_w1'], (W, 1)) / float(H * W)          # (W*C, Cr)
    se_b = jnp.tile(p['se_w2'], (1, W))                         # (Cr, W*C)
    w1f, t1 = _fold_bn(p['conv1_w'], p['conv1_b'], p['bn1_gamma'],
                       p['bn1_beta'], p['bn1_mean'], p['bn1_var'])
    w2f, t2 = _fold_bn(p['conv2_w'], p['conv2_b'], p['bn2_gamma'],
                       p['bn2_beta'], p['bn2_mean'], p['bn2_var'])
    return {
        'se_a': se_a,
        'se_b': se_b,
        'wb1': _make_banded(w1f, W),                            # (3, W*C, W*C)
        't1': jnp.tile(t1.reshape(1, C), (1, W)),               # (1, W*C)
        'wb2': _make_banded(w2f, W),                            # (3, W*C, W*Ch)
        't2': jnp.tile(t2.reshape(1, Ch), (1, W)),              # (1, W*Ch)
    }


# ------------------------------- SE_Conv forward -----------------------------
def se_conv_forward(x_nchw, prep):
    N, C, H, W = x_nchw.shape
    WC = W * C
    WCh = prep['t2'].shape[-1]
    Ch = WCh // W
    Cr = prep['se_a'].shape[-1]

    # NCHW -> lane-dense (N, H, W*C); boundary layout change only.
    x = jnp.transpose(x_nchw, (0, 2, 3, 1)).reshape(N, H, WC)

    out2d = pl.pallas_call(
        se_conv_kernel,
        out_shape=jax.ShapeDtypeStruct((N, H, WCh), x.dtype),
        grid=(N,),
        in_specs=[
            pl.BlockSpec((1, H, WC), lambda n: (n, 0, 0)),
            pl.BlockSpec((WC, Cr), lambda n: (0, 0)),
            pl.BlockSpec((Cr, WC), lambda n: (0, 0)),
            pl.BlockSpec((3, WC, WC), lambda n: (0, 0, 0)),
            pl.BlockSpec((1, WC), lambda n: (0, 0)),
            pl.BlockSpec((3, WC, WCh), lambda n: (0, 0, 0)),
            pl.BlockSpec((1, WCh), lambda n: (0, 0)),
        ],
        out_specs=pl.BlockSpec((1, H, WCh), lambda n: (n, 0, 0)),
        compiler_params=pltpu.CompilerParams(
            dimension_semantics=("parallel",)),
    )(x, prep['se_a'], prep['se_b'], prep['wb1'], prep['t1'],
      prep['wb2'], prep['t2'])

    return jnp.transpose(out2d.reshape(N, H, W, Ch), (0, 3, 1, 2))  # -> NCHW


# ------------------------------ pure-JAX reference ---------------------------
def ref_forward(x_nchw, p):
    x = jnp.transpose(x_nchw, (0, 2, 3, 1))
    y = jnp.mean(x, axis=(1, 2))
    h = jnp.maximum(y @ p['se_w1'], 0.0)
    s = jax.nn.sigmoid(h @ p['se_w2'])
    x = x * s[:, None, None, :]

    def cbr(x, w, b, g, bt, m, v):
        out = jax.lax.conv_general_dilated(
            x, w, (1, 1), 'SAME', dimension_numbers=('NHWC', 'HWIO', 'NHWC'))
        out = out + b
        sc = g / jnp.sqrt(v + _BN_EPS)
        out = (out - m) * sc + bt
        return jnp.maximum(out, 0.0)

    x = cbr(x, p['conv1_w'], p['conv1_b'],
            p['bn1_gamma'], p['bn1_beta'], p['bn1_mean'], p['bn1_var'])
    x = cbr(x, p['conv2_w'], p['conv2_b'],
            p['bn2_gamma'], p['bn2_beta'], p['bn2_mean'], p['bn2_var'])
    return jnp.transpose(x, (0, 3, 1, 2))


# --------------------------------- parameters --------------------------------
def init_params(key, C, reduction=8):
    Cr, Ch = C // reduction, C // 2
    ks = jax.random.split(key, 14)
    f32 = jnp.float32
    w_scale = 1.0 / (3.0 * float(C) ** 0.5)
    return {
        'se_w1': 0.3 * jax.random.normal(ks[0], (C, Cr), f32),
        'se_w2': 0.3 * jax.random.normal(ks[1], (Cr, C), f32),
        'conv1_w': w_scale * jax.random.normal(ks[2], (3, 3, C, C), f32),
        'conv1_b': 0.1 * jax.random.normal(ks[3], (C,), f32),
        'bn1_gamma': 1.0 + 0.1 * jax.random.normal(ks[4], (C,), f32),
        'bn1_beta': 0.1 * jax.random.normal(ks[5], (C,), f32),
        'bn1_mean': 0.1 * jax.random.normal(ks[6], (C,), f32),
        'bn1_var': jnp.abs(jax.random.normal(ks[7], (C,), f32)) + 0.5,
        'conv2_w': w_scale * jax.random.normal(ks[8], (3, 3, C, Ch), f32),
        'conv2_b': 0.1 * jax.random.normal(ks[9], (Ch,), f32),
        'bn2_gamma': 1.0 + 0.1 * jax.random.normal(ks[10], (Ch,), f32),
        'bn2_beta': 0.1 * jax.random.normal(ks[11], (Ch,), f32),
        'bn2_mean': 0.1 * jax.random.normal(ks[12], (Ch,), f32),
        'bn2_var': jnp.abs(jax.random.normal(ks[13], (Ch,), f32)) + 0.5,
    }


if __name__ == "__main__":
    N, C, H, W = 2, 16, 16, 16          # ch_in=16, reduction=8 -> SE hidden=2, out ch=8
    key = jax.random.PRNGKey(0)
    kx, kp = jax.random.split(key)
    x = jax.random.normal(kx, (N, C, H, W), jnp.float32)     # PyTorch-style NCHW input
    params = init_params(kp, C, reduction=8)

    prep = prepare_params(params, H, W)                      # one-time host folding
    out = jax.block_until_ready(se_conv_forward(x, prep))
    assert out.shape == (N, C // 2, H, W), out.shape

    ref = jax.block_until_ready(ref_forward(x, params))
    if bool(jnp.allclose(out, ref, atol=2e-4, rtol=2e-4)):
        print("KERNEL_OK")
    else:
        print("MISMATCH max_abs_err =", float(jnp.max(jnp.abs(out - ref))))
</pallas_src>

<mosaic_0001>
module attributes {stable_mosaic.version = 11 : i64} {
  func.func @se_conv_kernel(%arg0: i32, %arg1: memref<1x16x256xf32, #tpu.memory_space<vmem>>, %arg2: memref<256x2xf32, #tpu.memory_space<vmem>>, %arg3: memref<2x256xf32, #tpu.memory_space<vmem>>, %arg4: memref<3x256x256xf32, #tpu.memory_space<vmem>>, %arg5: memref<1x256xf32, #tpu.memory_space<vmem>>, %arg6: memref<3x256x128xf32, #tpu.memory_space<vmem>>, %arg7: memref<1x128xf32, #tpu.memory_space<vmem>>, %arg8: memref<1x16x128xf32, #tpu.memory_space<vmem>>) attributes {dimension_semantics = [#tpu.dimension_semantics<parallel>], iteration_bounds = array<i64: 2>, scalar_prefetch = 0 : i64, scratch_operands = 0 : i64, tpu.core_type = #tpu.core_type<tc>, window_params = [{transform_indices = @transform_0, window_bounds = array<i64: 1, 16, 256>}, {pipeline_mode = #tpu.pipeline_mode<synchronous>, transform_indices = @transform_1, window_bounds = array<i64: 256, 2>}, {pipeline_mode = #tpu.pipeline_mode<synchronous>, transform_indices = @transform_2, window_bounds = array<i64: 2, 256>}, {pipeline_mode = #tpu.pipeline_mode<synchronous>, transform_indices = @transform_3, window_bounds = array<i64: 3, 256, 256>}, {pipeline_mode = #tpu.pipeline_mode<synchronous>, transform_indices = @transform_4, window_bounds = array<i64: 1, 256>}, {pipeline_mode = #tpu.pipeline_mode<synchronous>, transform_indices = @transform_5, window_bounds = array<i64: 3, 256, 128>}, {pipeline_mode = #tpu.pipeline_mode<synchronous>, transform_indices = @transform_6, window_bounds = array<i64: 1, 128>}, {transform_indices = @transform_7, window_bounds = array<i64: 1, 16, 128>}]} {
    %c0 = arith.constant 0 : index
    %c0_0 = arith.constant 0 : index
    %c0_1 = arith.constant 0 : index
    %0 = vector.load %arg1[%c0, %c0_0, %c0_1] : memref<1x16x256xf32, #tpu.memory_space<vmem>>, vector<1x16x256xf32>
    %1 = vector.shape_cast %0 : vector<1x16x256xf32> to vector<16x256xf32>
    %cst = arith.constant dense<0.000000e+00> : vector<256xf32>
    %2 = vector.multi_reduction <add>, %1, %cst [0] : vector<16x256xf32> to vector<256xf32>
    %3 = vector.shape_cast %2 : vector<256xf32> to vector<1x256xf32>
    %c0_2 = arith.constant 0 : index
    %c0_3 = arith.constant 0 : index
    %4 = vector.load %arg2[%c0_2, %c0_3] : memref<256x2xf32, #tpu.memory_space<vmem>>, vector<256x2xf32>
    %cst_4 = arith.constant dense<0.000000e+00> : vector<1x2xf32>
    %5 = tpu.matmul %3, %4, %cst_4 {dimension_numbers = #tpu.dot_dimension_numbers<[1], [0], [0], [1], [0, 0, 1, 1], [], []>} : vector<1x256xf32>, vector<256x2xf32>, vector<1x2xf32> -> vector<1x2xf32>
    %cst_5 = arith.constant 0.000000e+00 : f32
    %6 = vector.broadcast %cst_5 : f32 to vector<1x2xf32>
    %7 = arith.maximumf %5, %6 : vector<1x2xf32>
    %c0_6 = arith.constant 0 : index
    %c0_7 = arith.constant 0 : index
    %8 = vector.load %arg3[%c0_6, %c0_7] : memref<2x256xf32, #tpu.memory_space<vmem>>, vector<2x256xf32>
    %cst_8 = arith.constant dense<0.000000e+00> : vector<1x256xf32>
    %9 = tpu.matmul %7, %8, %cst_8 {dimension_numbers = #tpu.dot_dimension_numbers<[1], [0], [0], [1], [0, 0, 1, 1], [], []>} : vector<1x2xf32>, vector<2x256xf32>, vector<1x256xf32> -> vector<1x256xf32>
    %10 = arith.negf %9 : vector<1x256xf32>
    %11 = math.exp %10 : vector<1x256xf32>
    %cst_9 = arith.constant 1.000000e+00 : f32
    %12 = vector.broadcast %cst_9 : f32 to vector<1x256xf32>
    %13 = arith.addf %12, %11 : vector<1x256xf32>
    %14 = arith.divf %12, %13 : vector<1x256xf32>
    %15 = vector.broadcast %14 : vector<1x256xf32> to vector<16x256xf32>
    %16 = arith.mulf %1, %15 : vector<16x256xf32>
    %17 = tpu.iota {dimensions = array<i32: 0>} : vector<16x16xi32>
    %18 = tpu.iota {dimensions = array<i32: 1>} : vector<16x16xi32>
    %c1_i32 = arith.constant 1 : i32
    %19 = vector.broadcast %c1_i32 : i32 to vector<16x16xi32>
    %20 = arith.addi %18, %19 : vector<16x16xi32>
    %21 = arith.cmpi eq, %17, %20 : vector<16x16xi32>
    %22 = arith.extui %21 : vector<16x16xi1> to vector<16x16xi32>
    %23 = arith.sitofp %22 : vector<16x16xi32> to vector<16x16xf32>
    %c1_i32_10 = arith.constant 1 : i32
    %24 = vector.broadcast %c1_i32_10 : i32 to vector<16x16xi32>
    %25 = arith.addi %17, %24 : vector<16x16xi32>
    %26 = arith.cmpi eq, %18, %25 : vector<16x16xi32>
    %27 = arith.extui %26 : vector<16x16xi1> to vector<16x16xi32>
    %28 = arith.sitofp %27 : vector<16x16xi32> to vector<16x16xf32>
    %cst_11 = arith.constant dense<0.000000e+00> : vector<16x256xf32>
    %29 = tpu.matmul %23, %16, %cst_11 {dimension_numbers = #tpu.dot_dimension_numbers<[1], [0], [0], [1], [0, 0, 1, 1], [], []>} : vector<16x16xf32>, vector<16x256xf32>, vector<16x256xf32> -> vector<16x256xf32>
    %cst_12 = arith.constant dense<0.000000e+00> : vector<16x256xf32>
    %30 = tpu.matmul %28, %16, %cst_12 {dimension_numbers = #tpu.dot_dimension_numbers<[1], [0], [0], [1], [0, 0, 1, 1], [], []>} : vector<16x16xf32>, vector<16x256xf32>, vector<16x256xf32> -> vector<16x256xf32>
    %c0_13 = arith.constant 0 : index
    %c0_14 = arith.constant 0 : index
    %c0_15 = arith.constant 0 : index
    %31 = vector.load %arg4[%c0_13, %c0_14, %c0_15] : memref<3x256x256xf32, #tpu.memory_space<vmem>>, vector<1x256x256xf32>
    %32 = vector.shape_cast %31 : vector<1x256x256xf32> to vector<256x256xf32>
    %cst_16 = arith.constant dense<0.000000e+00> : vector<16x256xf32>
    %33 = tpu.matmul %29, %32, %cst_16 {dimension_numbers = #tpu.dot_dimension_numbers<[1], [0], [0], [1], [0, 0, 1, 1], [], []>} : vector<16x256xf32>, vector<256x256xf32>, vector<16x256xf32> -> vector<16x256xf32>
    %c1 = arith.constant 1 : index
    %c0_17 = arith.constant 0 : index
    %c0_18 = arith.constant 0 : index
    %34 = vector.load %arg4[%c1, %c0_17, %c0_18] : memref<3x256x256xf32, #tpu.memory_space<vmem>>, vector<1x256x256xf32>
    %35 = vector.shape_cast %34 : vector<1x256x256xf32> to vector<256x256xf32>
    %cst_19 = arith.constant dense<0.000000e+00> : vector<16x256xf32>
    %36 = tpu.matmul %16, %35, %cst_19 {dimension_numbers = #tpu.dot_dimension_numbers<[1], [0], [0], [1], [0, 0, 1, 1], [], []>} : vector<16x256xf32>, vector<256x256xf32>, vector<16x256xf32> -> vector<16x256xf32>
    %37 = arith.addf %33, %36 : vector<16x256xf32>
    %c2 = arith.constant 2 : index
    %c0_20 = arith.constant 0 : index
    %c0_21 = arith.constant 0 : index
    %38 = vector.load %arg4[%c2, %c0_20, %c0_21] : memref<3x256x256xf32, #tpu.memory_space<vmem>>, vector<1x256x256xf32>
    %39 = vector.shape_cast %38 : vector<1x256x256xf32> to vector<256x256xf32>
    %cst_22 = arith.constant dense<0.000000e+00> : vector<16x256xf32>
    %40 = tpu.matmul %30, %39, %cst_22 {dimension_numbers = #tpu.dot_dimension_numbers<[1], [0], [0], [1], [0, 0, 1, 1], [], []>} : vector<16x256xf32>, vector<256x256xf32>, vector<16x256xf32> -> vector<16x256xf32>
    %41 = arith.addf %37, %40 : vector<16x256xf32>
    %c0_23 = arith.constant 0 : index
    %c0_24 = arith.constant 0 : index
    %42 = vector.load %arg5[%c0_23, %c0_24] : memref<1x256xf32, #tpu.memory_space<vmem>>, vector<1x256xf32>
    %43 = vector.broadcast %42 : vector<1x256xf32> to vector<16x256xf32>
    %44 = arith.addf %41, %43 : vector<16x256xf32>
    %cst_25 = arith.constant 0.000000e+00 : f32
    %45 = vector.broadcast %cst_25 : f32 to vector<16x256xf32>
    %46 = arith.maximumf %44, %45 : vector<16x256xf32>
    %cst_26 = arith.constant dense<0.000000e+00> : vector<16x256xf32>
    %47 = tpu.matmul %23, %46, %cst_26 {dimension_numbers = #tpu.dot_dimension_numbers<[1], [0], [0], [1], [0, 0, 1, 1], [], []>} : vector<16x16xf32>, vector<16x256xf32>, vector<16x256xf32> -> vector<16x256xf32>
    %cst_27 = arith.constant dense<0.000000e+00> : vector<16x256xf32>
    %48 = tpu.matmul %28, %46, %cst_27 {dimension_numbers = #tpu.dot_dimension_numbers<[1], [0], [0], [1], [0, 0, 1, 1], [], []>} : vector<16x16xf32>, vector<16x256xf32>, vector<16x256xf32> -> vector<16x256xf32>
    %c0_28 = arith.constant 0 : index
    %c0_29 = arith.constant 0 : index
    %c0_30 = arith.constant 0 : index
    %49 = vector.load %arg6[%c0_28, %c0_29, %c0_30] : memref<3x256x128xf32, #tpu.memory_space<vmem>>, vector<1x256x128xf32>
    %50 = vector.shape_cast %49 : vector<1x256x128xf32> to vector<256x128xf32>
    %cst_31 = arith.constant dense<0.000000e+00> : vector<16x128xf32>
    %51 = tpu.matmul %47, %50, %cst_31 {dimension_numbers = #tpu.dot_dimension_numbers<[1], [0], [0], [1], [0, 0, 1, 1], [], []>} : vector<16x256xf32>, vector<256x128xf32>, vector<16x128xf32> -> vector<16x128xf32>
    %c1_32 = arith.constant 1 : index
    %c0_33 = arith.constant 0 : index
    %c0_34 = arith.constant 0 : index
    %52 = vector.load %arg6[%c1_32, %c0_33, %c0_34] : memref<3x256x128xf32, #tpu.memory_space<vmem>>, vector<1x256x128xf32>
    %53 = vector.shape_cast %52 : vector<1x256x128xf32> to vector<256x128xf32>
    %cst_35 = arith.constant dense<0.000000e+00> : vector<16x128xf32>
    %54 = tpu.matmul %46, %53, %cst_35 {dimension_numbers = #tpu.dot_dimension_numbers<[1], [0], [0], [1], [0, 0, 1, 1], [], []>} : vector<16x256xf32>, vector<256x128xf32>, vector<16x128xf32> -> vector<16x128xf32>
    %55 = arith.addf %51, %54 : vector<16x128xf32>
    %c2_36 = arith.constant 2 : index
    %c0_37 = arith.constant 0 : index
    %c0_38 = arith.constant 0 : index
    %56 = vector.load %arg6[%c2_36, %c0_37, %c0_38] : memref<3x256x128xf32, #tpu.memory_space<vmem>>, vector<1x256x128xf32>
    %57 = vector.shape_cast %56 : vector<1x256x128xf32> to vector<256x128xf32>
    %cst_39 = arith.constant dense<0.000000e+00> : vector<16x128xf32>
    %58 = tpu.matmul %48, %57, %cst_39 {dimension_numbers = #tpu.dot_dimension_numbers<[1], [0], [0], [1], [0, 0, 1, 1], [], []>} : vector<16x256xf32>, vector<256x128xf32>, vector<16x128xf32> -> vector<16x128xf32>
    %59 = arith.addf %55, %58 : vector<16x128xf32>
    %c0_40 = arith.constant 0 : index
    %c0_41 = arith.constant 0 : index
    %60 = vector.load %arg7[%c0_40, %c0_41] : memref<1x128xf32, #tpu.memory_space<vmem>>, vector<1x128xf32>
    %61 = vector.broadcast %60 : vector<1x128xf32> to vector<16x128xf32>
    %62 = arith.addf %59, %61 : vector<16x128xf32>
    %cst_42 = arith.constant 0.000000e+00 : f32
    %63 = vector.broadcast %cst_42 : f32 to vector<16x128xf32>
    %64 = arith.maximumf %62, %63 : vector<16x128xf32>
    %c0_43 = arith.constant 0 : index
    %c0_44 = arith.constant 0 : index
    %c0_45 = arith.constant 0 : index
    %65 = vector.load %arg8[%c0_43, %c0_44, %c0_45] : memref<1x16x128xf32, #tpu.memory_space<vmem>>, vector<1x16x128xf32>
    %66 = vector.shape_cast %65 : vector<1x16x128xf32> to vector<16x128xf32>
    %67 = vector.shape_cast %64 : vector<16x128xf32> to vector<1x16x128xf32>
    tpu.vector_store %arg8[%c0_43, %c0_44, %c0_45], %67 {strides = array<i32>} : memref<1x16x128xf32, #tpu.memory_space<vmem>>, vector<1x16x128xf32>,
    return
  }
  func.func @transform_0(%arg0: i32) -> (i32, i32, i32) {
    %c0_i32 = arith.constant 0 : i32
    %c0_i32_0 = arith.constant 0 : i32
    %c0_i32_1 = arith.constant 0 : i32
    return %arg0, %c0_i32, %c0_i32_0 : i32, i32, i32
  }
  func.func @transform_1(%arg0: i32) -> (i32, i32) {
    %c0_i32 = arith.constant 0 : i32
    %c0_i32_0 = arith.constant 0 : i32
    %c0_i32_1 = arith.constant 0 : i32
    return %c0_i32, %c0_i32_0 : i32, i32
  }
  func.func @transform_2(%arg0: i32) -> (i32, i32) {
    %c0_i32 = arith.constant 0 : i32
    %c0_i32_0 = arith.constant 0 : i32
    %c0_i32_1 = arith.constant 0 : i32
    return %c0_i32, %c0_i32_0 : i32, i32
  }
  func.func @transform_3(%arg0: i32) -> (i32, i32, i32) {
    %c0_i32 = arith.constant 0 : i32
    %c0_i32_0 = arith.constant 0 : i32
    %c0_i32_1 = arith.constant 0 : i32
    %c0_i32_2 = arith.constant 0 : i32
    return %c0_i32, %c0_i32_0, %c0_i32_1 : i32, i32, i32
  }
  func.func @transform_4(%arg0: i32) -> (i32, i32) {
    %c0_i32 = arith.constant 0 : i32
    %c0_i32_0 = arith.constant 0 : i32
    %c0_i32_1 = arith.constant 0 : i32
    return %c0_i32, %c0_i32_0 : i32, i32
  }
  func.func @transform_5(%arg0: i32) -> (i32, i32, i32) {
    %c0_i32 = arith.constant 0 : i32
    %c0_i32_0 = arith.constant 0 : i32
    %c0_i32_1 = arith.constant 0 : i32
    %c0_i32_2 = arith.constant 0 : i32
    return %c0_i32, %c0_i32_0, %c0_i32_1 : i32, i32, i32
  }
  func.func @transform_6(%arg0: i32) -> (i32, i32) {
    %c0_i32 = arith.constant 0 : i32
    %c0_i32_0 = arith.constant 0 : i32
    %c0_i32_1 = arith.constant 0 : i32
    return %c0_i32, %c0_i32_0 : i32, i32
  }
  func.func @transform_7(%arg0: i32) -> (i32, i32, i32) {
    %c0_i32 = arith.constant 0 : i32
    %c0_i32_0 = arith.constant 0 : i32
    %c0_i32_1 = arith.constant 0 : i32
    return %arg0, %c0_i32, %c0_i32_0 : i32, i32, i32
  }
}

</mosaic_0001>

<llo_original>
// kernel: tpu_custom_call.1
$region0: #{tpu_custom_call.1}
  #allocation0 [shape = 'u32[]', space=smem, size = 0x4, offset = 0x4, fixed_abs, tag = 'smem constant byte address 0x4 - core index']
  #allocation1 [shape = 'u32[144,128]{1,0:T(1,128)}', space=vmem, size = 0x12000, scoped, tag = 'internal scratch']
  %s0 = inlined_call_operand.vmem [shape: f32[2,16,256], index: 0, kind: input, shape index: {}]
  %s1 = inlined_call_operand.vmem [shape: f32[256,2], index: 1, kind: input, shape index: {}]
  %s2 = inlined_call_operand.vmem [shape: f32[2,256], index: 2, kind: input, shape index: {}]
  %s3 = inlined_call_operand.hbm [shape: f32[3,256,256], index: 3, kind: input, shape index: {}]
  %s4 = inlined_call_operand.vmem [shape: f32[1,256], index: 4, kind: input, shape index: {}]
  %s5 = inlined_call_operand.hbm [shape: f32[3,256,128], index: 5, kind: input, shape index: {}]
  %s6 = inlined_call_operand.vmem [shape: f32[1,128], index: 6, kind: input, shape index: {}]
  %s7 = inlined_call_operand.hbm [shape: f32[2,16,128], index: 7, kind: output, shape index: {}]
  %s8 = sld [smem:[#allocation0]]
  $region69: #{tpu_custom_call.1} parent=0
    _
  %s10 = ssub.s32 1, %s8
  %s11 = scalar_select 0, %s10, %s8
  $region1: #{tpu_custom_call.1} parent=0
    #allocation2 [shape = 'u8[786432]{0}', space=vmem, size = 0xc0000, scoped, tag = 'input window, operand 3, single buffered']
    #allocation3 [shape = 's32[2]{0}', space=sflag, size = 0x8, scoped, tag = 'scoped memory for tpu_custom_call.1']
    #allocation4 [shape = 's32[2]{0}', space=sflag, size = 0x8, scoped, tag = 'scoped memory for tpu_custom_call.1']
    #allocation5 [shape = 'u8[393216]{0}', space=vmem, size = 0x60000, scoped, tag = 'input window, operand 5, single buffered']
    #allocation6 [shape = 's32[1]{0}', space=sflag, size = 0x4, scoped, tag = 'scoped memory for tpu_custom_call.1']
    #allocation7 [shape = 'u8[16384]{0}', space=vmem, size = 0x4000, scoped, tag = 'output window, operand 0']
    %12 = vsyncpa [#allocation3], 0
    %13 = vsyncpa [#allocation6], 0
    %14 = vsyncpa [#allocation4], 0
    %s15 = scalar_lea.sflag [#allocation4], 1
    %16 = vsyncpa %s15, 0
    loop: start=0, step=1, limit=4
    $region2: #{tpu_custom_call.1} parent=1 // loop_pre_header
      _
    $region3: #{tpu_custom_call.1} parent=1 // loop_header
      %s18 = sphi 0, %s22
      %p19 = scmp.ge.s32.totalorder %s18, 4
      %s28 = sphi 0, %s30
      %s31 = sphi 0, %s28
      %s32 = sphi 0, %s31
      %s48 = sphi 0, %s32
      %s52 = sphi 0, %s52
      %s54 = sphi 0, %s52
      %s55 = sphi 0, %s54
      %s69 = sphi 0, %s55
      %s73 = sphi 0, %s73
      %s75 = sphi 0, %s73
      %s76 = sphi 0, %s75
      %s90 = sphi 0, %s76
      %s94 = sphi 0, %s94
      %s96 = sphi 0, %s94
      %s97 = sphi 0, %s96
      %s111 = sphi 0, %s97
      %s115 = sphi 0, %s115
      %s117 = sphi 0, %s115
      %s118 = sphi 0, %s117
      %s132 = sphi 0, %s118
      %s136 = sphi 0, %s136
      %s138 = sphi 0, %s136
      %s139 = sphi 0, %s138
      %s153 = sphi 0, %s139
      %s157 = sphi 0, %s157
      %s159 = sphi 0, %s157
      %s160 = sphi 0, %s159
      %s174 = sphi 0, %s160
      %s180 = sphi 0, %s182
      %s183 = sphi 0, %s180
      %s184 = sphi 0, %s183
      %s200 = sphi 0, %s184
    $region4: #{tpu_custom_call.1} parent=1 // loop_header_branch
      %21 = sbr.rel (%p19) target = $region8
    $region5: #{tpu_custom_call.1} parent=1 // loop_body
      %s23 = ssub.s32 %s18, 1
      %s24 = ssub.s32 %s18, 2
      %s25 = sadd.s32 %s18, 1
      %s26 = ssub.s32 %s18, %s25
      %p27 = scmp.eq.s32.totalorder %s26, 0
      %s29 = sadd.s32 %s28, 1
      %s30 = scalar_select %p27, %s28, %s29
      %p33 = pneg %p27
      %p34 = scmp.eq.s32.totalorder %s18, 1
      %p35 = por %p33, %p34
      %p36 = scmp.ne.s32.totalorder %s28, %s31
      %p37 = scmp.eq.s32.totalorder %s18, 0
      %p38 = por %p36, %p37
      %p39 = scmp.ne.s32.totalorder %s28, %s31
      %p40 = scmp.eq.s32.totalorder %s23, 1
      %p41 = por %p39, %p40
      %p42 = scmp.ne.s32.totalorder %s31, %s32
      %p43 = scmp.eq.s32.totalorder %s23, 0
      %p44 = por %p42, %p43
      %p45 = scmp.ne.s32.totalorder %s31, %s32
      %p46 = scmp.eq.s32.totalorder %s24, 1
      %p47 = por %p45, %p46
      %p49 = scmp.ne.s32.totalorder %s32, %s48
      %p50 = scmp.eq.s32.totalorder %s24, 0
      %p51 = por %p49, %p50
      %s53 = sadd.s32 %s52, 1
      %p56 = scmp.eq.s32.totalorder %s18, 1
      %p57 = scmp.ne.s32.totalorder %s52, %s54
      %p58 = scmp.eq.s32.totalorder %s18, 0
      %p59 = por %p57, %p58
      %p60 = scmp.ne.s32.totalorder %s52, %s54
      %p61 = scmp.eq.s32.totalorder %s23, 1
      %p62 = por %p60, %p61
      %p63 = scmp.ne.s32.totalorder %s54, %s55
      %p64 = scmp.eq.s32.totalorder %s23, 0
      %p65 = por %p63, %p64
      %p66 = scmp.ne.s32.totalorder %s54, %s55
      %p67 = scmp.eq.s32.totalorder %s24, 1
      %p68 = por %p66, %p67
      %p70 = scmp.ne.s32.totalorder %s55, %s69
      %p71 = scmp.eq.s32.totalorder %s24, 0
      %p72 = por %p70, %p71
      %s74 = sadd.s32 %s73, 1
      %p77 = scmp.eq.s32.totalorder %s18, 1
      %p78 = scmp.ne.s32.totalorder %s73, %s75
      %p79 = scmp.eq.s32.totalorder %s18, 0
      %p80 = por %p78, %p79
      %p81 = scmp.ne.s32.totalorder %s73, %s75
      %p82 = scmp.eq.s32.totalorder %s23, 1
      %p83 = por %p81, %p82
      %p84 = scmp.ne.s32.totalorder %s75, %s76
      %p85 = scmp.eq.s32.totalorder %s23, 0
      %p86 = por %p84, %p85
      %p87 = scmp.ne.s32.totalorder %s75, %s76
      %p88 = scmp.eq.s32.totalorder %s24, 1
      %p89 = por %p87, %p88
      %p91 = scmp.ne.s32.totalorder %s76, %s90
      %p92 = scmp.eq.s32.totalorder %s24, 0
      %p93 = por %p91, %p92
      %s95 = sadd.s32 %s94, 1
      %p98 = scmp.eq.s32.totalorder %s18, 1
      %p99 = scmp.ne.s32.totalorder %s94, %s96
      %p100 = scmp.eq.s32.totalorder %s18, 0
      %p101 = por %p99, %p100
      %p102 = scmp.ne.s32.totalorder %s94, %s96
      %p103 = scmp.eq.s32.totalorder %s23, 1
      %p104 = por %p102, %p103
      %p105 = scmp.ne.s32.totalorder %s96, %s97
      %p106 = scmp.eq.s32.totalorder %s23, 0
      %p107 = por %p105, %p106
      %p108 = scmp.ne.s32.totalorder %s96, %s97
      %p109 = scmp.eq.s32.totalorder %s24, 1
      %p110 = por %p108, %p109
      %p112 = scmp.ne.s32.totalorder %s97, %s111
      %p113 = scmp.eq.s32.totalorder %s24, 0
      %p114 = por %p112, %p113
      %s116 = sadd.s32 %s115, 1
      %p119 = scmp.eq.s32.totalorder %s18, 1
      %p120 = scmp.ne.s32.totalorder %s115, %s117
      %p121 = scmp.eq.s32.totalorder %s18, 0
      %p122 = por %p120, %p121
      %p123 = scmp.ne.s32.totalorder %s115, %s117
      %p124 = scmp.eq.s32.totalorder %s23, 1
      %p125 = por %p123, %p124
      %p126 = scmp.ne.s32.totalorder %s117, %s118
      %p127 = scmp.eq.s32.totalorder %s23, 0
      %p128 = por %p126, %p127
      %p129 = scmp.ne.s32.totalorder %s117, %s118
      %p130 = scmp.eq.s32.totalorder %s24, 1
      %p131 = por %p129, %p130
      %p133 = scmp.ne.s32.totalorder %s118, %s132
      %p134 = scmp.eq.s32.totalorder %s24, 0
      %p135 = por %p133, %p134
      %s137 = sadd.s32 %s136, 1
      %p140 = scmp.eq.s32.totalorder %s18, 1
      %p141 = scmp.ne.s32.totalorder %s136, %s138
      %p142 = scmp.eq.s32.totalorder %s18, 0
      %p143 = por %p141, %p142
      %p144 = scmp.ne.s32.totalorder %s136, %s138
      %p145 = scmp.eq.s32.totalorder %s23, 1
      %p146 = por %p144, %p145
      %p147 = scmp.ne.s32.totalorder %s138, %s139
      %p148 = scmp.eq.s32.totalorder %s23, 0
      %p149 = por %p147, %p148
      %p150 = scmp.ne.s32.totalorder %s138, %s139
      %p151 = scmp.eq.s32.totalorder %s24, 1
      %p152 = por %p150, %p151
      %p154 = scmp.ne.s32.totalorder %s139, %s153
      %p155 = scmp.eq.s32.totalorder %s24, 0
      %p156 = por %p154, %p155
      %s158 = sadd.s32 %s157, 1
      %p161 = scmp.eq.s32.totalorder %s18, 1
      %p162 = scmp.ne.s32.totalorder %s157, %s159
      %p163 = scmp.eq.s32.totalorder %s18, 0
      %p164 = por %p162, %p163
      %p165 = scmp.ne.s32.totalorder %s157, %s159
      %p166 = scmp.eq.s32.totalorder %s23, 1
      %p167 = por %p165, %p166
      %p168 = scmp.ne.s32.totalorder %s159, %s160
      %p169 = scmp.eq.s32.totalorder %s23, 0
      %p170 = por %p168, %p169
      %p171 = scmp.ne.s32.totalorder %s159, %s160
      %p172 = scmp.eq.s32.totalorder %s24, 1
      %p173 = por %p171, %p172
      %p175 = scmp.ne.s32.totalorder %s160, %s174
      %p176 = scmp.eq.s32.totalorder %s24, 0
      %p177 = por %p175, %p176
      %s178 = ssub.s32 %s18, %s25
      %p179 = scmp.eq.s32.totalorder %s178, 0
      %s181 = sadd.s32 %s180, 1
      %s182 = scalar_select %p179, %s180, %s181
      %p185 = pneg %p179
      %p186 = scmp.eq.s32.totalorder %s18, 1
      %p187 = por %p185, %p186
      %p188 = scmp.ne.s32.totalorder %s180, %s183
      %p189 = scmp.eq.s32.totalorder %s18, 0
      %p190 = por %p188, %p189
      %p191 = scmp.ne.s32.totalorder %s180, %s183
      %p192 = scmp.eq.s32.totalorder %s23, 1
      %p193 = por %p191, %p192
      %p194 = scmp.ne.s32.totalorder %s183, %s184
      %p195 = scmp.eq.s32.totalorder %s23, 0
      %p196 = por %p194, %p195
      %p197 = scmp.ne.s32.totalorder %s183, %s184
      %p198 = scmp.eq.s32.totalorder %s24, 1
      %p199 = por %p197, %p198
      %p201 = scmp.ne.s32.totalorder %s184, %s200
      %p202 = scmp.eq.s32.totalorder %s24, 0
      %p203 = por %p201, %p202
      %p204 = scmp.le.s32.totalorder 1, %s18
      %p205 = scmp.lt.s32.totalorder %s18, 3
      %p206 = pnand %p204, %p205
      %p207 = pneg %p206
      // Predicated region
      $region9: #{tpu_custom_call.1} parent=5 // pred_check
        _
      $region10: #{tpu_custom_call.1} parent=5 // pred_check_branch
        %209 = sbr.rel (%p206) target = $region12
      $region11: #{tpu_custom_call.1} parent=5 // pred_region
        %s210 = ssub.s32 %s18, 1
        // Predicated region
        $region13: #{tpu_custom_call.1} parent=11 // pred_check
          %p211 = pneg %p65
        $region14: #{tpu_custom_call.1} parent=11 // pred_check_branch
          %213 = sbr.rel (%p211) target = $region16
        $region15: #{tpu_custom_call.1} parent=11 // pred_region
          _
        $region16: #{tpu_custom_call.1} parent=11 // pred_fallthru
          _
        // Predicated region
        $region17: #{tpu_custom_call.1} parent=11 // pred_check
          %p214 = pneg %p86
        $region18: #{tpu_custom_call.1} parent=11 // pred_check_branch
          %216 = sbr.rel (%p214) target = $region20
        $region19: #{tpu_custom_call.1} parent=11 // pred_region
          _
        $region20: #{tpu_custom_call.1} parent=11 // pred_fallthru
          _
        // Predicated region
        $region21: #{tpu_custom_call.1} parent=11 // pred_check
          %p217 = pneg %p107
        $region22: #{tpu_custom_call.1} parent=11 // pred_check_branch
          %219 = sbr.rel (%p217) target = $region24
        $region23: #{tpu_custom_call.1} parent=11 // pred_region
          %s221 = ssub.s32 24576, 24576
          %222 = vsyncadd [#allocation3], %s221
          %s223 = sshll.u32 [#allocation2], 4
          %s224 = int_to_ptr.vmem [resolvable:$true] %s223
          %229 = dma.hbm_to_vmem [thread:$0]  %s3, 24576, %s224, [#allocation3], 256, 256, 16
        $region24: #{tpu_custom_call.1} parent=11 // pred_fallthru
          _
        // Predicated region
        $region25: #{tpu_custom_call.1} parent=11 // pred_check
          %p230 = pneg %p128
        $region26: #{tpu_custom_call.1} parent=11 // pred_check_branch
          %232 = sbr.rel (%p230) target = $region28
        $region27: #{tpu_custom_call.1} parent=11 // pred_region
          _
        $region28: #{tpu_custom_call.1} parent=11 // pred_fallthru
          _
        // Predicated region
        $region29: #{tpu_custom_call.1} parent=11 // pred_check
          %p233 = pneg %p149
        $region30: #{tpu_custom_call.1} parent=11 // pred_check_branch
          %235 = sbr.rel (%p233) target = $region32
        $region31: #{tpu_custom_call.1} parent=11 // pred_region
          %s237 = ssub.s32 12288, 12288
          %238 = vsyncadd [#allocation6], %s237
          %s239 = sshll.u32 [#allocation5], 4
          %s240 = int_to_ptr.vmem [resolvable:$true] %s239
          %245 = dma.hbm_to_vmem [thread:$0]  %s5, 12288, %s240, [#allocation6], 128, 128, 8
        $region32: #{tpu_custom_call.1} parent=11 // pred_fallthru
          _
        // Predicated region
        $region33: #{tpu_custom_call.1} parent=11 // pred_check
          %p246 = pneg %p170
        $region34: #{tpu_custom_call.1} parent=11 // pred_check_branch
          %248 = sbr.rel (%p246) target = $region36
        $region35: #{tpu_custom_call.1} parent=11 // pred_region
          _
        $region36: #{tpu_custom_call.1} parent=11 // pred_fallthru
          _
      $region12: #{tpu_custom_call.1} parent=5 // pred_fallthru
        _
      %p249 = scmp.lt.s32.totalorder %s18, 2
      // Predicated region
      $region37: #{tpu_custom_call.1} parent=5 // pred_check
        %p250 = pneg %p249
      $region38: #{tpu_custom_call.1} parent=5 // pred_check_branch
        %252 = sbr.rel (%p250) target = $region40
      $region39: #{tpu_custom_call.1} parent=5 // pred_region
        // Predicated region
        $region41: #{tpu_custom_call.1} parent=39 // pred_check
          %p253 = pneg %p38
        $region42: #{tpu_custom_call.1} parent=39 // pred_check_branch
          %255 = sbr.rel (%p253) target = $region44
        $region43: #{tpu_custom_call.1} parent=39 // pred_region
          %p256 = scmp.lt.s32.totalorder %s18, 1
          %s257 = scalar_select %p256, %s18, 1
          %s258 = smul.addr %s257, 4
          %s259 = smul.addr %s258, 8
          %s260 = scalar_lea.vmem %s0, %s259
        $region44: #{tpu_custom_call.1} parent=39 // pred_fallthru
          _
      $region40: #{tpu_custom_call.1} parent=5 // pred_fallthru
        _
      %p261 = scmp.le.s32.totalorder 1, %s18
      %p262 = scmp.lt.s32.totalorder %s18, 3
      %p263 = pnand %p261, %p262
      %p264 = pneg %p263
      // Predicated region
      $region45: #{tpu_custom_call.1} parent=5 // pred_check
        _
      $region46: #{tpu_custom_call.1} parent=5 // pred_check_branch
        %266 = sbr.rel (%p263) target = $region48
      $region47: #{tpu_custom_call.1} parent=5 // pred_region
        %s267 = ssub.s32 %s18, 1
        // Predicated region
        $region49: #{tpu_custom_call.1} parent=47 // pred_check
          %p268 = pneg %p107
        $region50: #{tpu_custom_call.1} parent=47 // pred_check_branch
          %270 = sbr.rel (%p268) target = $region52
        $region51: #{tpu_custom_call.1} parent=47 // pred_region
          %271 = dma.done [#allocation3], 24576
        $region52: #{tpu_custom_call.1} parent=47 // pred_fallthru
          _
        // Predicated region
        $region53: #{tpu_custom_call.1} parent=47 // pred_check
          %p272 = pneg %p149
        $region54: #{tpu_custom_call.1} parent=47 // pred_check_branch
          %274 = sbr.rel (%p272) target = $region56
        $region55: #{tpu_custom_call.1} parent=47 // pred_region
          %275 = dma.done [#allocation6], 12288
        $region56: #{tpu_custom_call.1} parent=47 // pred_fallthru
          _
        %p276 = scmp.lt.s32.totalorder %s23, 1
        %s277 = scalar_select %p276, %s23, 1
        %s278 = smul.addr %s277, 4
        %s279 = smul.addr %s278, 8
        %s280 = scalar_lea.vmem %s0, %s279
        %p281 = pneg %p44
        %p282 = pneg %p41
        %p283 = pneg %p65
        %p284 = pneg %p62
        %p285 = pneg %p86
        %p286 = pneg %p83
        %p287 = pneg %p107
        %p288 = pneg %p104
        %p289 = pneg %p128
        %p290 = pneg %p125
        %p291 = pneg %p149
        %p292 = pneg %p146
        %p293 = pneg %p170
        %p294 = pneg %p167
        %p295 = pneg %p196
        %p296 = pneg %p193
        %s297 = sand.u32 %s183, 1
        %s298 = scalar_lea.sflag [#allocation4], %s297
        %s299 = sand.u32 %s183, 1
        %s300 = smul.addr %s299, 16
        %s301 = scalar_lea.vmem [#allocation7], %s300
        %p302 = scmp.lt.s32.totalorder %s23, 1
        %s303 = scalar_select %p302, %s23, 1
        %s304 = smul.addr %s303, 4
        %s305 = smul.addr %s304, 8
        %s306 = scalar_lea.vmem %s0, %s305
        %v307 = vld [vmem:[%s306] sm:$0xff]
        %v308 = vld [vmem:[%s306 + $0x8] sm:$0xff]
        %v309 = vld [vmem:[%s306 + $0x10] sm:$0xff]
        %v310 = vld [vmem:[%s306 + $0x18] sm:$0xff]
        %v311 = vadd.f32 %v307, %v309
        %v312 = vrot.slane %v311, 4
        %v313 = vadd.f32 %v311, %v312
        %v314 = vrot.slane %v313, 2
        %v315 = vadd.f32 %v313, %v314
        %v316 = vrot.slane %v315, 1
        %v317 = vadd.f32 %v315, %v316
        %v318 = vadd.f32 %v308, %v310
        %v319 = vrot.slane %v318, 4
        %v320 = vadd.f32 %v318, %v319
        %v321 = vrot.slane %v320, 2
        %v322 = vadd.f32 %v320, %v321
        %v323 = vrot.slane %v322, 1
        %v324 = vadd.f32 %v322, %v323
        %v325 = vld [vmem:[%s1] sm:$0xff]
        %v326 = vld [vmem:[%s1 + $0x8] sm:$0xff]
        %v327 = vld [vmem:[%s1 + $0x10] sm:$0xff]
        %v328 = vld [vmem:[%s1 + $0x18] sm:$0xff]
        %v329 = vld [vmem:[%s1 + $0x20] sm:$0xff]
        %v330 = vld [vmem:[%s1 + $0x28] sm:$0xff]
        %v331 = vld [vmem:[%s1 + $0x30] sm:$0xff]
        %v332 = vld [vmem:[%s1 + $0x38] sm:$0xff]
        %v333 = vld [vmem:[%s1 + $0x40] sm:$0xff]
        %v334 = vld [vmem:[%s1 + $0x48] sm:$0xff]
        %v335 = vld [vmem:[%s1 + $0x50] sm:$0xff]
        %v336 = vld [vmem:[%s1 + $0x58] sm:$0xff]
        %v337 = vld [vmem:[%s1 + $0x60] sm:$0xff]
        %v338 = vld [vmem:[%s1 + $0x68] sm:$0xff]
        %v339 = vld [vmem:[%s1 + $0x70] sm:$0xff]
        %v340 = vld [vmem:[%s1 + $0x78] sm:$0xff]
        %v341 = vld [vmem:[%s1 + $0x80] sm:$0xff]
        %v342 = vld [vmem:[%s1 + $0x88] sm:$0xff]
        %v343 = vld [vmem:[%s1 + $0x90] sm:$0xff]
        %v344 = vld [vmem:[%s1 + $0x98] sm:$0xff]
        %v345 = vld [vmem:[%s1 + $0xa0] sm:$0xff]
        %v346 = vld [vmem:[%s1 + $0xa8] sm:$0xff]
        %v347 = vld [vmem:[%s1 + $0xb0] sm:$0xff]
        %v348 = vld [vmem:[%s1 + $0xb8] sm:$0xff]
        %v349 = vld [vmem:[%s1 + $0xc0] sm:$0xff]
        %v350 = vld [vmem:[%s1 + $0xc8] sm:$0xff]
        %v351 = vld [vmem:[%s1 + $0xd0] sm:$0xff]
        %v352 = vld [vmem:[%s1 + $0xd8] sm:$0xff]
        %v353 = vld [vmem:[%s1 + $0xe0] sm:$0xff]
        %v354 = vld [vmem:[%s1 + $0xe8] sm:$0xff]
        %v355 = vld [vmem:[%s1 + $0xf0] sm:$0xff]
        %v356 = vld [vmem:[%s1 + $0xf8] sm:$0xff]
        %357 = vmatprep.subr.mxu0 0.0
        %358 = vmatpush1.msra.mxu0 %v325
        %359 = vmatprep.subr.mxu0 0.0
        %360 = vmatpush1.msra.mxu0 %v326
        %361 = vmatprep.subr.mxu0 0.0
        %362 = vmatpush1.msra.mxu0 %v327
        %363 = vmatprep.subr.mxu0 0.0
        %364 = vmatpush1.msra.mxu0 %v328
        %365 = vmatprep.subr.mxu0 0.0
        %366 = vmatpush1.msra.mxu0 %v329
        %367 = vmatprep.subr.mxu0 0.0
        %368 = vmatpush1.msra.mxu0 %v330
        %369 = vmatprep.subr.mxu0 0.0
        %370 = vmatpush1.msra.mxu0 %v331
        %371 = vmatprep.subr.mxu0 0.0
        %372 = vmatpush1.msra.mxu0 %v332
        %373 = vmatprep.subr.mxu0 0.0
        %374 = vmatpush1.msra.mxu0 %v333
        %375 = vmatprep.subr.mxu0 0.0
        %376 = vmatpush1.msra.mxu0 %v334
        %377 = vmatprep.subr.mxu0 0.0
        %378 = vmatpush1.msra.mxu0 %v335
        %379 = vmatprep.subr.mxu0 0.0
        %380 = vmatpush1.msra.mxu0 %v336
        %381 = vmatprep.subr.mxu0 0.0
        %382 = vmatpush1.msra.mxu0 %v337
        %383 = vmatprep.subr.mxu0 0.0
        %384 = vmatpush1.msra.mxu0 %v338
        %385 = vmatprep.subr.mxu0 0.0
        %386 = vmatpush1.msra.mxu0 %v339
        %387 = vmatprep.subr.mxu0 0.0
        %388 = vmatpush1.msra.mxu0 %v340
        %389 = vmatprep.subr.mxu0 0.0
        %390 = vmatpush1.msra.mxu0 %v341
        %391 = vmatprep.subr.mxu0 0.0
        %392 = vmatpush1.msra.mxu0 %v342
        %393 = vmatprep.subr.mxu0 0.0
        %394 = vmatpush1.msra.mxu0 %v343
        %395 = vmatprep.subr.mxu0 0.0
        %396 = vmatpush1.msra.mxu0 %v344
        %397 = vmatprep.subr.mxu0 0.0
        %398 = vmatpush1.msra.mxu0 %v345
        %399 = vmatprep.subr.mxu0 0.0
        %400 = vmatpush1.msra.mxu0 %v346
        %401 = vmatprep.subr.mxu0 0.0
        %402 = vmatpush1.msra.mxu0 %v347
        %403 = vmatprep.subr.mxu0 0.0
        %404 = vmatpush1.msra.mxu0 %v348
        %405 = vmatprep.subr.mxu0 0.0
        %406 = vmatpush1.msra.mxu0 %v349
        %407 = vmatprep.subr.mxu0 0.0
        %408 = vmatpush1.msra.mxu0 %v350
        %409 = vmatprep.subr.mxu0 0.0
        %410 = vmatpush1.msra.mxu0 %v351
        %411 = vmatprep.subr.mxu0 0.0
        %412 = vmatpush1.msra.mxu0 %v352
        %413 = vmatprep.subr.mxu0 0.0
        %414 = vmatpush1.msra.mxu0 %v353
        %415 = vmatprep.subr.mxu0 0.0
        %416 = vmatpush1.msra.mxu0 %v354
        %417 = vmatprep.subr.mxu0 0.0
        %418 = vmatpush1.msra.mxu0 %v355
        %419 = vmatprep.subr.mxu0 0.0
        %420 = vmatpush1.msra.mxu0 %v356
        %421 = vmatprep.mubr.f32.mxu0 %v324
        %422 = vmatmul.mubr.f32.gmra.mrb[0].mxu0 %v317
        %v423 = vpop.f32.mrb[0].mxu0
        %v424 = vadd.f32 0.0, %v423
        %v425 = vpop.f32.mrb[0].mxu0
        %426 = vdwg.mxu0
        %v427 = vmax.f32 %v424, 0.0
        %v428 = vld [vmem:[%s2] sm:$0xf]
        %v431 = vunpack.c.l.s4 1983009808
        %v432 = vunpack.c.0.s8 %v431
        %v433 = vlaneseq
        %v434 = vshrl.u32 %v433, 7
        %v435 = vsub.s32 %v432, %v434
        %v436 = vrot.slane %v428, %v435
        %v437 = vcombine.high %v436, %v436
        %vm438 = vcmask 15360
        %v440 = vsel %vm438, %v427, 0
        %vm442 = vcmask 1041408
        %v443 = vsel %vm442, %v436, 0
        %v445 = vsel %vm442, %v437, 0
        %447 = vmatprep.subr.mxu0 %v445
        %448 = vmatpush1.msra.mxu0 %v443
        %449 = vmatprep.subr.mxu0 0.0
        %450 = vmatpush1.msra.mxu0 0.0
        %451 = vmatprep.subr.mxu0 0.0
        %452 = vmatpush1.msra.mxu0 0.0
        %453 = vmatprep.subr.mxu0 0.0
        %454 = vmatpush1.msra.mxu0 0.0
        %455 = vmatprep.subr.mxu0 0.0
        %456 = vmatpush1.msra.mxu0 0.0
        %457 = vmatprep.subr.mxu0 0.0
        %458 = vmatpush1.msra.mxu0 0.0
        %459 = vmatprep.subr.mxu0 0.0
        %460 = vmatpush1.msra.mxu0 0.0
        %461 = vmatprep.subr.mxu0 0.0
        %462 = vmatpush1.msra.mxu0 0.0
        %463 = vmatprep.subr.mxu0 0.0
        %464 = vmatpush1.msra.mxu0 0.0
        %465 = vmatprep.subr.mxu0 0.0
        %466 = vmatpush1.msra.mxu0 0.0
        %467 = vmatprep.subr.mxu0 0.0
        %468 = vmatpush1.msra.mxu0 0.0
        %469 = vmatprep.subr.mxu0 0.0
        %470 = vmatpush1.msra.mxu0 0.0
        %471 = vmatprep.subr.mxu0 0.0
        %472 = vmatpush1.msra.mxu0 0.0
        %473 = vmatprep.subr.mxu0 0.0
        %474 = vmatpush1.msra.mxu0 0.0
        %475 = vmatprep.subr.mxu0 0.0
        %476 = vmatpush1.msra.mxu0 0.0
        %477 = vmatprep.subr.mxu0 0.0
        %478 = vmatpush1.msra.mxu0 0.0
        %479 = vmatprep.subr.mxu0 0.0
        %480 = vmatpush1.msra.mxu0 0.0
        %481 = vmatprep.subr.mxu0 0.0
        %482 = vmatpush1.msra.mxu0 0.0
        %483 = vmatprep.subr.mxu0 0.0
        %484 = vmatpush1.msra.mxu0 0.0
        %485 = vmatprep.subr.mxu0 0.0
        %486 = vmatpush1.msra.mxu0 0.0
        %487 = vmatprep.subr.mxu0 0.0
        %488 = vmatpush1.msra.mxu0 0.0
        %489 = vmatprep.subr.mxu0 0.0
        %490 = vmatpush1.msra.mxu0 0.0
        %491 = vmatprep.subr.mxu0 0.0
        %492 = vmatpush1.msra.mxu0 0.0
        %493 = vmatprep.subr.mxu0 0.0
        %494 = vmatpush1.msra.mxu0 0.0
        %495 = vmatprep.subr.mxu0 0.0
        %496 = vmatpush1.msra.mxu0 0.0
        %497 = vmatprep.subr.mxu0 0.0
        %498 = vmatpush1.msra.mxu0 0.0
        %499 = vmatprep.subr.mxu0 0.0
        %500 = vmatpush1.msra.mxu0 0.0
        %501 = vmatprep.subr.mxu0 0.0
        %502 = vmatpush1.msra.mxu0 0.0
        %503 = vmatprep.subr.mxu0 0.0
        %504 = vmatpush1.msra.mxu0 0.0
        %505 = vmatprep.subr.mxu0 0.0
        %506 = vmatpush1.msra.mxu0 0.0
        %507 = vmatprep.subr.mxu0 0.0
        %508 = vmatpush1.msra.mxu0 0.0
        %509 = vmatprep.subr.mxu0 0.0
        %510 = vmatpush1.msra.mxu0 0.0
        %511 = vmatprep.mubr.f32.mxu0 0.0
        %512 = vmatmul.mubr.f32.gmra.mrb[0].mxu0 %v440
        %v513 = vpop.f32.mrb[0].mxu0
        %v514 = vadd.f32 0.0, %v513
        %v515 = vpop.f32.mrb[0].mxu0
        %v516 = vadd.f32 0.0, %v515
        %517 = vdwg.mxu0
        %v518 = vxor.u32 %v514, 2147483648
        %v519 = vxor.u32 %v516, 2147483648
        %v520 = vmul.f32 %v518, 1.442695
        %v521 = vpow.pop %v520
        %v522 = vmul.f32 %v519, 1.442695
        %v523 = vpow.pop %v522
        %v524 = vadd.f32 %v521, 1.0
        %v525 = vadd.f32 %v523, 1.0
        %v526 = vrcp.pop %v524
        %v527 = vmul.f32 1.0, %v526
        %v528 = vrcp.pop %v525
        %v529 = vmul.f32 1.0, %v528
        %v530 = vlaneseq
        %v531 = vshrl.u32 %v530, 7
        %v532 = vsub.s32 0, %v531
        %v533 = vrot.slane %v527, %v532
        %v534 = vlaneseq
        %v535 = vshrl.u32 %v534, 7
        %v536 = vsub.s32 0, %v535
        %v537 = vrot.slane %v529, %v536
        %v538 = vmul.f32 %v307, %v533
        %v539 = vmul.f32 %v308, %v537
        %v540 = vmul.f32 %v309, %v533
        %v541 = vmul.f32 %v310, %v537
        %v542 = vlaneseq
        %v543 = vshrl.u32 %v542, 7
        %v544 = vadd.s32 %v543, 8
        %v545 = vlaneseq
        %v546 = vand.u32 %v545, 127
        %v547 = vadd.s32 %v546, 1
        %vm548 = vcmp.eq.s32.totalorder %v543, %v547
        %vm549 = vcmp.eq.s32.totalorder %v544, %v547
        %v550 = vsel %vm548, 1, 0
        %v551 = vsel %vm549, 1, 0
        %v552 = vcvt.s32.f32 %v550
        %v553 = vcvt.s32.f32 %v551
        %v554 = vadd.s32 %v543, 1
        %v555 = vadd.s32 %v544, 1
        %vm556 = vcmp.eq.s32.totalorder %v546, %v554
        %vm557 = vcmp.eq.s32.totalorder %v546, %v555
        %v558 = vsel %vm556, 1, 0
        %v559 = vsel %vm557, 1, 0
        %v560 = vcvt.s32.f32 %v558
        %v561 = vcvt.s32.f32 %v559
        %vm562 = vcmask 130048
        %v564 = vsel %vm562, %v552, 0
        %v567 = vsel %vm562, %v553, 0
        %569 = vmatprep.subr.mxu0 %v539
        %570 = vmatpush1.msra.mxu0 %v538
        %571 = vmatprep.subr.mxu0 %v541
        %572 = vmatpush1.msra.mxu0 %v540
        %573 = vmatprep.subr.mxu0 0.0
        %574 = vmatpush1.msra.mxu0 0.0
        %575 = vmatprep.subr.mxu0 0.0
        %576 = vmatpush1.msra.mxu0 0.0
        %577 = vmatprep.subr.mxu0 0.0
        %578 = vmatpush1.msra.mxu0 0.0
        %579 = vmatprep.subr.mxu0 0.0
        %580 = vmatpush1.msra.mxu0 0.0
        %581 = vmatprep.subr.mxu0 0.0
        %582 = vmatpush1.msra.mxu0 0.0
        %583 = vmatprep.subr.mxu0 0.0
        %584 = vmatpush1.msra.mxu0 0.0
        %585 = vmatprep.subr.mxu0 0.0
        %586 = vmatpush1.msra.mxu0 0.0
        %587 = vmatprep.subr.mxu0 0.0
        %588 = vmatpush1.msra.mxu0 0.0
        %589 = vmatprep.subr.mxu0 0.0
        %590 = vmatpush1.msra.mxu0 0.0
        %591 = vmatprep.subr.mxu0 0.0
        %592 = vmatpush1.msra.mxu0 0.0
        %593 = vmatprep.subr.mxu0 0.0
        %594 = vmatpush1.msra.mxu0 0.0
        %595 = vmatprep.subr.mxu0 0.0
        %596 = vmatpush1.msra.mxu0 0.0
        %597 = vmatprep.subr.mxu0 0.0
        %598 = vmatpush1.msra.mxu0 0.0
        %599 = vmatprep.subr.mxu0 0.0
        %600 = vmatpush1.msra.mxu0 0.0
        %601 = vmatprep.subr.mxu0 0.0
        %602 = vmatpush1.msra.mxu0 0.0
        %603 = vmatprep.subr.mxu0 0.0
        %604 = vmatpush1.msra.mxu0 0.0
        %605 = vmatprep.subr.mxu0 0.0
        %606 = vmatpush1.msra.mxu0 0.0
        %607 = vmatprep.subr.mxu0 0.0
        %608 = vmatpush1.msra.mxu0 0.0
        %609 = vmatprep.subr.mxu0 0.0
        %610 = vmatpush1.msra.mxu0 0.0
        %611 = vmatprep.subr.mxu0 0.0
        %612 = vmatpush1.msra.mxu0 0.0
        %613 = vmatprep.subr.mxu0 0.0
        %614 = vmatpush1.msra.mxu0 0.0
        %615 = vmatprep.subr.mxu0 0.0
        %616 = vmatpush1.msra.mxu0 0.0
        %617 = vmatprep.subr.mxu0 0.0
        %618 = vmatpush1.msra.mxu0 0.0
        %619 = vmatprep.subr.mxu0 0.0
        %620 = vmatpush1.msra.mxu0 0.0
        %621 = vmatprep.subr.mxu0 0.0
        %622 = vmatpush1.msra.mxu0 0.0
        %623 = vmatprep.subr.mxu0 0.0
        %624 = vmatpush1.msra.mxu0 0.0
        %625 = vmatprep.subr.mxu0 0.0
        %626 = vmatpush1.msra.mxu0 0.0
        %627 = vmatprep.subr.mxu0 0.0
        %628 = vmatpush1.msra.mxu0 0.0
        %629 = vmatprep.subr.mxu0 0.0
        %630 = vmatpush1.msra.mxu0 0.0
        %631 = vmatprep.subr.mxu0 0.0
        %632 = vmatpush1.msra.mxu0 0.0
        %633 = vmatprep.mubr.f32.mxu0 0.0
        %634 = vmatmul.mubr.f32.gmra.mrb[0].mxu0 %v564
        %v635 = vpop.f32.mrb[0].mxu0
        %v636 = vadd.f32 0.0, %v635
        %v637 = vpop.f32.mrb[0].mxu0
        %v638 = vadd.f32 0.0, %v637
        %639 = vmatprep.mubr.f32.mxu0 0.0
        %640 = vmatmul.mubr.f32.gmra.mrb[0].mxu0 %v567
        %v641 = vpop.f32.mrb[0].mxu0
        %v642 = vadd.f32 0.0, %v641
        %v643 = vpop.f32.mrb[0].mxu0
        %v644 = vadd.f32 0.0, %v643
        %645 = vdwg.mxu0
        %v647 = vsel %vm562, %v560, 0
        %v650 = vsel %vm562, %v561, 0
        %652 = vmatprep.subr.mxu0 %v539
        %653 = vmatpush1.msra.mxu0 %v538
        %654 = vmatprep.subr.mxu0 %v541
        %655 = vmatpush1.msra.mxu0 %v540
        %656 = vmatprep.subr.mxu0 0.0
        %657 = vmatpush1.msra.mxu0 0.0
        %658 = vmatprep.subr.mxu0 0.0
        %659 = vmatpush1.msra.mxu0 0.0
        %660 = vmatprep.subr.mxu0 0.0
        %661 = vmatpush1.msra.mxu0 0.0
        %662 = vmatprep.subr.mxu0 0.0
        %663 = vmatpush1.msra.mxu0 0.0
        %664 = vmatprep.subr.mxu0 0.0
        %665 = vmatpush1.msra.mxu0 0.0
        %666 = vmatprep.subr.mxu0 0.0
        %667 = vmatpush1.msra.mxu0 0.0
        %668 = vmatprep.subr.mxu0 0.0
        %669 = vmatpush1.msra.mxu0 0.0
        %670 = vmatprep.subr.mxu0 0.0
        %671 = vmatpush1.msra.mxu0 0.0
        %672 = vmatprep.subr.mxu0 0.0
        %673 = vmatpush1.msra.mxu0 0.0
        %674 = vmatprep.subr.mxu0 0.0
        %675 = vmatpush1.msra.mxu0 0.0
        %676 = vmatprep.subr.mxu0 0.0
        %677 = vmatpush1.msra.mxu0 0.0
        %678 = vmatprep.subr.mxu0 0.0
        %679 = vmatpush1.msra.mxu0 0.0
        %680 = vmatprep.subr.mxu0 0.0
        %681 = vmatpush1.msra.mxu0 0.0
        %682 = vmatprep.subr.mxu0 0.0
        %683 = vmatpush1.msra.mxu0 0.0
        %684 = vmatprep.subr.mxu0 0.0
        %685 = vmatpush1.msra.mxu0 0.0
        %686 = vmatprep.subr.mxu0 0.0
        %687 = vmatpush1.msra.mxu0 0.0
        %688 = vmatprep.subr.mxu0 0.0
        %689 = vmatpush1.msra.mxu0 0.0
        %690 = vmatprep.subr.mxu0 0.0
        %691 = vmatpush1.msra.mxu0 0.0
        %692 = vmatprep.subr.mxu0 0.0
        %693 = vmatpush1.msra.mxu0 0.0
        %694 = vmatprep.subr.mxu0 0.0
        %695 = vmatpush1.msra.mxu0 0.0
        %696 = vmatprep.subr.mxu0 0.0
        %697 = vmatpush1.msra.mxu0 0.0
        %698 = vmatprep.subr.mxu0 0.0
        %699 = vmatpush1.msra.mxu0 0.0
        %700 = vmatprep.subr.mxu0 0.0
        %701 = vmatpush1.msra.mxu0 0.0
        %702 = vmatprep.subr.mxu0 0.0
        %703 = vmatpush1.msra.mxu0 0.0
        %704 = vmatprep.subr.mxu0 0.0
        %705 = vmatpush1.msra.mxu0 0.0
        %706 = vmatprep.subr.mxu0 0.0
        %707 = vmatpush1.msra.mxu0 0.0
        %708 = vmatprep.subr.mxu0 0.0
        %709 = vmatpush1.msra.mxu0 0.0
        %710 = vmatprep.subr.mxu0 0.0
        %711 = vmatpush1.msra.mxu0 0.0
        %712 = vmatprep.subr.mxu0 0.0
        %713 = vmatpush1.msra.mxu0 0.0
        %714 = vmatprep.subr.mxu0 0.0
        %715 = vmatpush1.msra.mxu0 0.0
        %716 = vmatprep.mubr.f32.mxu0 0.0
        %717 = vmatmul.mubr.f32.gmra.mrb[0].mxu0 %v647
        %v718 = vpop.f32.mrb[0].mxu0
        %v719 = vadd.f32 0.0, %v718
        %v720 = vpop.f32.mrb[0].mxu0
        %v721 = vadd.f32 0.0, %v720
        %722 = vmatprep.mubr.f32.mxu0 0.0
        %723 = vmatmul.mubr.f32.gmra.mrb[0].mxu0 %v650
        %v724 = vpop.f32.mrb[0].mxu0
        %v725 = vadd.f32 0.0, %v724
        %v726 = vpop.f32.mrb[0].mxu0
        %v727 = vadd.f32 0.0, %v726
        %728 = vdwg.mxu0
        %v729 = vld [vmem:[#allocation2] sm:$0xff]
        %v730 = vld [vmem:[#allocation2 + $0x8] sm:$0xff]
        %v731 = vld [vmem:[#allocation2 + $0x10] sm:$0xff]
        %v732 = vld [vmem:[#allocation2 + $0x18] sm:$0xff]
        %v733 = vld [vmem:[#allocation2 + $0x20] sm:$0xff]
        %v734 = vld [vmem:[#allocation2 + $0x28] sm:$0xff]
        %v735 = vld [vmem:[#allocation2 + $0x30] sm:$0xff]
        %v736 = vld [vmem:[#allocation2 + $0x38] sm:$0xff]
        %v737 = vld [vmem:[#allocation2 + $0x40] sm:$0xff]
        %v738 = vld [vmem:[#allocation2 + $0x48] sm:$0xff]
        %v739 = vld [vmem:[#allocation2 + $0x50] sm:$0xff]
        %v740 = vld [vmem:[#allocation2 + $0x58] sm:$0xff]
        %v741 = vld [vmem:[#allocation2 + $0x60] sm:$0xff]
        %v742 = vld [vmem:[#allocation2 + $0x68] sm:$0xff]
        %v743 = vld [vmem:[#allocation2 + $0x70] sm:$0xff]
        %v744 = vld [vmem:[#allocation2 + $0x78] sm:$0xff]
        %v745 = vld [vmem:[#allocation2 + $0x80] sm:$0xff]
        %v746 = vld [vmem:[#allocation2 + $0x88] sm:$0xff]
        %v747 = vld [vmem:[#allocation2 + $0x90] sm:$0xff]
        %v748 = vld [vmem:[#allocation2 + $0x98] sm:$0xff]
        %v749 = vld [vmem:[#allocation2 + $0xa0] sm:$0xff]
        %v750 = vld [vmem:[#allocation2 + $0xa8] sm:$0xff]
        %v751 = vld [vmem:[#allocation2 + $0xb0] sm:$0xff]
        %v752 = vld [vmem:[#allocation2 + $0xb8] sm:$0xff]
        %v753 = vld [vmem:[#allocation2 + $0xc0] sm:$0xff]
        %v754 = vld [vmem:[#allocation2 + $0xc8] sm:$0xff]
        %v755 = vld [vmem:[#allocation2 + $0xd0] sm:$0xff]
        %v756 = vld [vmem:[#allocation2 + $0xd8] sm:$0xff]
        %v757 = vld [vmem:[#allocation2 + $0xe0] sm:$0xff]
        %v758 = vld [vmem:[#allocation2 + $0xe8] sm:$0xff]
        %v759 = vld [vmem:[#allocation2 + $0xf0] sm:$0xff]
        %v760 = vld [vmem:[#allocation2 + $0xf8] sm:$0xff]
        %v761 = vld [vmem:[#allocation2 + $0x100] sm:$0xff]
        %v762 = vld [vmem:[#allocation2 + $0x108] sm:$0xff]
        %v763 = vld [vmem:[#allocation2 + $0x110] sm:$0xff]
        %v764 = vld [vmem:[#allocation2 + $0x118] sm:$0xff]
        %v765 = vld [vmem:[#allocation2 + $0x120] sm:$0xff]
        %v766 = vld [vmem:[#allocation2 + $0x128] sm:$0xff]
        %v767 = vld [vmem:[#allocation2 + $0x130] sm:$0xff]
        %v768 = vld [vmem:[#allocation2 + $0x138] sm:$0xff]
        %v769 = vld [vmem:[#allocation2 + $0x140] sm:$0xff]
        %v770 = vld [vmem:[#allocation2 + $0x148] sm:$0xff]
        %v771 = vld [vmem:[#allocation2 + $0x150] sm:$0xff]
        %v772 = vld [vmem:[#allocation2 + $0x158] sm:$0xff]
        %v773 = vld [vmem:[#allocation2 + $0x160] sm:$0xff]
        %v774 = vld [vmem:[#allocation2 + $0x168] sm:$0xff]
        %v775 = vld [vmem:[#allocation2 + $0x170] sm:$0xff]
        %v776 = vld [vmem:[#allocation2 + $0x178] sm:$0xff]
        %v777 = vld [vmem:[#allocation2 + $0x180] sm:$0xff]
        %v778 = vld [vmem:[#allocation2 + $0x188] sm:$0xff]
        %v779 = vld [vmem:[#allocation2 + $0x190] sm:$0xff]
        %v780 = vld [vmem:[#allocation2 + $0x198] sm:$0xff]
        %v781 = vld [vmem:[#allocation2 + $0x1a0] sm:$0xff]
        %v782 = vld [vmem:[#allocation2 + $0x1a8] sm:$0xff]
        %v783 = vld [vmem:[#allocation2 + $0x1b0] sm:$0xff]
        %v784 = vld [vmem:[#allocation2 + $0x1b8] sm:$0xff]
        %v785 = vld [vmem:[#allocation2 + $0x1c0] sm:$0xff]
        %v786 = vld [vmem:[#allocation2 + $0x1c8] sm:$0xff]
        %v787 = vld [vmem:[#allocation2 + $0x1d0] sm:$0xff]
        %v788 = vld [vmem:[#allocation2 + $0x1d8] sm:$0xff]
        %v789 = vld [vmem:[#allocation2 + $0x1e0] sm:$0xff]
        %v790 = vld [vmem:[#allocation2 + $0x1e8] sm:$0xff]
        %v791 = vld [vmem:[#allocation2 + $0x1f0] sm:$0xff]
        %v792 = vld [vmem:[#allocation2 + $0x1f8] sm:$0xff]
        %s793 = scalar_lea.vmem [#allocation2], 512
        %v794 = vld [vmem:[%s793] sm:$0xff]
        %v795 = vld [vmem:[%s793 + $0x8] sm:$0xff]
        %v796 = vld [vmem:[%s793 + $0x10] sm:$0xff]
        %v797 = vld [vmem:[%s793 + $0x18] sm:$0xff]
        %v798 = vld [vmem:[%s793 + $0x20] sm:$0xff]
        %v799 = vld [vmem:[%s793 + $0x28] sm:$0xff]
        %v800 = vld [vmem:[%s793 + $0x30] sm:$0xff]
        %v801 = vld [vmem:[%s793 + $0x38] sm:$0xff]
        %v802 = vld [vmem:[%s793 + $0x40] sm:$0xff]
        %v803 = vld [vmem:[%s793 + $0x48] sm:$0xff]
        %v804 = vld [vmem:[%s793 + $0x50] sm:$0xff]
        %v805 = vld [vmem:[%s793 + $0x58] sm:$0xff]
        %v806 = vld [vmem:[%s793 + $0x60] sm:$0xff]
        %v807 = vld [vmem:[%s793 + $0x68] sm:$0xff]
        %v808 = vld [vmem:[%s793 + $0x70] sm:$0xff]
        %v809 = vld [vmem:[%s793 + $0x78] sm:$0xff]
        %v810 = vld [vmem:[%s793 + $0x80] sm:$0xff]
        %v811 = vld [vmem:[%s793 + $0x88] sm:$0xff]
        %v812 = vld [vmem:[%s793 + $0x90] sm:$0xff]
        %v813 = vld [vmem:[%s793 + $0x98] sm:$0xff]
        %v814 = vld [vmem:[%s793 + $0xa0] sm:$0xff]
        %v815 = vld [vmem:[%s793 + $0xa8] sm:$0xff]
        %v816 = vld [vmem:[%s793 + $0xb0] sm:$0xff]
        %v817 = vld [vmem:[%s793 + $0xb8] sm:$0xff]
        %v818 = vld [vmem:[%s793 + $0xc0] sm:$0xff]
        %v819 = vld [vmem:[%s793 + $0xc8] sm:$0xff]
        %v820 = vld [vmem:[%s793 + $0xd0] sm:$0xff]
        %v821 = vld [vmem:[%s793 + $0xd8] sm:$0xff]
        %v822 = vld [vmem:[%s793 + $0xe0] sm:$0xff]
        %v823 = vld [vmem:[%s793 + $0xe8] sm:$0xff]
        %v824 = vld [vmem:[%s793 + $0xf0] sm:$0xff]
        %v825 = vld [vmem:[%s793 + $0xf8] sm:$0xff]
        %v826 = vld [vmem:[%s793 + $0x100] sm:$0xff]
        %v827 = vld [vmem:[%s793 + $0x108] sm:$0xff]
        %v828 = vld [vmem:[%s793 + $0x110] sm:$0xff]
        %v829 = vld [vmem:[%s793 + $0x118] sm:$0xff]
        %v830 = vld [vmem:[%s793 + $0x120] sm:$0xff]
        %v831 = vld [vmem:[%s793 + $0x128] sm:$0xff]
        %v832 = vld [vmem:[%s793 + $0x130] sm:$0xff]
        %v833 = vld [vmem:[%s793 + $0x138] sm:$0xff]
        %v834 = vld [vmem:[%s793 + $0x140] sm:$0xff]
        %v835 = vld [vmem:[%s793 + $0x148] sm:$0xff]
        %v836 = vld [vmem:[%s793 + $0x150] sm:$0xff]
        %v837 = vld [vmem:[%s793 + $0x158] sm:$0xff]
        %v838 = vld [vmem:[%s793 + $0x160] sm:$0xff]
        %v839 = vld [vmem:[%s793 + $0x168] sm:$0xff]
        %v840 = vld [vmem:[%s793 + $0x170] sm:$0xff]
        %v841 = vld [vmem:[%s793 + $0x178] sm:$0xff]
        %v842 = vld [vmem:[%s793 + $0x180] sm:$0xff]
        %v843 = vld [vmem:[%s793 + $0x188] sm:$0xff]
        %v844 = vld [vmem:[%s793 + $0x190] sm:$0xff]
        %v845 = vld [vmem:[%s793 + $0x198] sm:$0xff]
        %v846 = vld [vmem:[%s793 + $0x1a0] sm:$0xff]
        %v847 = vld [vmem:[%s793 + $0x1a8] sm:$0xff]
        %v848 = vld [vmem:[%s793 + $0x1b0] sm:$0xff]
        %v849 = vld [vmem:[%s793 + $0x1b8] sm:$0xff]
        %v850 = vld [vmem:[%s793 + $0x1c0] sm:$0xff]
        %v851 = vld [vmem:[%s793 + $0x1c8] sm:$0xff]
        %v852 = vld [vmem:[%s793 + $0x1d0] sm:$0xff]
        %v853 = vld [vmem:[%s793 + $0x1d8] sm:$0xff]
        %v854 = vld [vmem:[%s793 + $0x1e0] sm:$0xff]
        %v855 = vld [vmem:[%s793 + $0x1e8] sm:$0xff]
        %v856 = vld [vmem:[%s793 + $0x1f0] sm:$0xff]
        %v857 = vld [vmem:[%s793 + $0x1f8] sm:$0xff]
        %858 = vmatprep.subr.mxu0 %v795
        %859 = vmatpush1.msra.mxu0 %v794
        %860 = vmatprep.subr.mxu0 %v797
        %861 = vmatpush1.msra.mxu0 %v796
        %862 = vmatprep.subr.mxu0 %v799
        %863 = vmatpush1.msra.mxu0 %v798
        %864 = vmatprep.subr.mxu0 %v801
        %865 = vmatpush1.msra.mxu0 %v800
        %866 = vmatprep.subr.mxu0 %v803
        %867 = vmatpush1.msra.mxu0 %v802
        %868 = vmatprep.subr.mxu0 %v805
        %869 = vmatpush1.msra.mxu0 %v804
        %870 = vmatprep.subr.mxu0 %v807
        %871 = vmatpush1.msra.mxu0 %v806
        %872 = vmatprep.subr.mxu0 %v809
        %873 = vmatpush1.msra.mxu0 %v808
        %874 = vmatprep.subr.mxu0 %v811
        %875 = vmatpush1.msra.mxu0 %v810
        %876 = vmatprep.subr.mxu0 %v813
        %877 = vmatpush1.msra.mxu0 %v812
        %878 = vmatprep.subr.mxu0 %v815
        %879 = vmatpush1.msra.mxu0 %v814
        %880 = vmatprep.subr.mxu0 %v817
        %881 = vmatpush1.msra.mxu0 %v816
        %882 = vmatprep.subr.mxu0 %v819
        %883 = vmatpush1.msra.mxu0 %v818
        %884 = vmatprep.subr.mxu0 %v821
        %885 = vmatpush1.msra.mxu0 %v820
        %886 = vmatprep.subr.mxu0 %v823
        %887 = vmatpush1.msra.mxu0 %v822
        %888 = vmatprep.subr.mxu0 %v825
        %889 = vmatpush1.msra.mxu0 %v824
        %890 = vmatprep.subr.mxu0 %v827
        %891 = vmatpush1.msra.mxu0 %v826
        %892 = vmatprep.subr.mxu0 %v829
        %893 = vmatpush1.msra.mxu0 %v828
        %894 = vmatprep.subr.mxu0 %v831
        %895 = vmatpush1.msra.mxu0 %v830
        %896 = vmatprep.subr.mxu0 %v833
        %897 = vmatpush1.msra.mxu0 %v832
        %898 = vmatprep.subr.mxu0 %v835
        %899 = vmatpush1.msra.mxu0 %v834
        %900 = vmatprep.subr.mxu0 %v837
        %901 = vmatpush1.msra.mxu0 %v836
        %902 = vmatprep.subr.mxu0 %v839
        %903 = vmatpush1.msra.mxu0 %v838
        %904 = vmatprep.subr.mxu0 %v841
        %905 = vmatpush1.msra.mxu0 %v840
        %906 = vmatprep.subr.mxu0 %v843
        %907 = vmatpush1.msra.mxu0 %v842
        %908 = vmatprep.subr.mxu0 %v845
        %909 = vmatpush1.msra.mxu0 %v844
        %910 = vmatprep.subr.mxu0 %v847
        %911 = vmatpush1.msra.mxu0 %v846
        %912 = vmatprep.subr.mxu0 %v849
        %913 = vmatpush1.msra.mxu0 %v848
        %914 = vmatprep.subr.mxu0 %v851
        %915 = vmatpush1.msra.mxu0 %v850
        %916 = vmatprep.subr.mxu0 %v853
        %917 = vmatpush1.msra.mxu0 %v852
        %918 = vmatprep.subr.mxu0 %v855
        %919 = vmatpush1.msra.mxu0 %v854
        %920 = vmatprep.subr.mxu0 %v857
        %921 = vmatpush1.msra.mxu0 %v856
        %922 = vmatprep.mubr.f32.mxu0 %v539
        %923 = vmatmul.mubr.f32.gmra.mrb[0].mxu0 %v538
        %v924 = vpop.f32.mrb[0].mxu0
        %v925 = vadd.f32 0.0, %v924
        %v926 = vpop.f32.mrb[0].mxu0
        %v927 = vadd.f32 0.0, %v926
        %928 = vmatprep.mubr.f32.mxu0 %v541
        %929 = vmatmul.mubr.f32.gmra.mrb[0].mxu0 %v540
        %v930 = vpop.f32.mrb[0].mxu0
        %v931 = vadd.f32 0.0, %v930
        %v932 = vpop.f32.mrb[0].mxu0
        %v933 = vadd.f32 0.0, %v932
        %934 = vdwg.mxu0
        %935 = vmatprep.subr.mxu0 %v730
        %936 = vmatpush1.msra.mxu0 %v729
        %937 = vmatprep.subr.mxu0 %v732
        %938 = vmatpush1.msra.mxu0 %v731
        %939 = vmatprep.subr.mxu0 %v734
        %940 = vmatpush1.msra.mxu0 %v733
        %941 = vmatprep.subr.mxu0 %v736
        %942 = vmatpush1.msra.mxu0 %v735
        %943 = vmatprep.subr.mxu0 %v738
        %944 = vmatpush1.msra.mxu0 %v737
        %945 = vmatprep.subr.mxu0 %v740
        %946 = vmatpush1.msra.mxu0 %v739
        %947 = vmatprep.subr.mxu0 %v742
        %948 = vmatpush1.msra.mxu0 %v741
        %949 = vmatprep.subr.mxu0 %v744
        %950 = vmatpush1.msra.mxu0 %v743
        %951 = vmatprep.subr.mxu0 %v746
        %952 = vmatpush1.msra.mxu0 %v745
        %953 = vmatprep.subr.mxu0 %v748
        %954 = vmatpush1.msra.mxu0 %v747
        %955 = vmatprep.subr.mxu0 %v750
        %956 = vmatpush1.msra.mxu0 %v749
        %957 = vmatprep.subr.mxu0 %v752
        %958 = vmatpush1.msra.mxu0 %v751
        %959 = vmatprep.subr.mxu0 %v754
        %960 = vmatpush1.msra.mxu0 %v753
        %961 = vmatprep.subr.mxu0 %v756
        %962 = vmatpush1.msra.mxu0 %v755
        %963 = vmatprep.subr.mxu0 %v758
        %964 = vmatpush1.msra.mxu0 %v757
        %965 = vmatprep.subr.mxu0 %v760
        %966 = vmatpush1.msra.mxu0 %v759
        %967 = vmatprep.subr.mxu0 %v762
        %968 = vmatpush1.msra.mxu0 %v761
        %969 = vmatprep.subr.mxu0 %v764
        %970 = vmatpush1.msra.mxu0 %v763
        %971 = vmatprep.subr.mxu0 %v766
        %972 = vmatpush1.msra.mxu0 %v765
        %973 = vmatprep.subr.mxu0 %v768
        %974 = vmatpush1.msra.mxu0 %v767
        %975 = vmatprep.subr.mxu0 %v770
        %976 = vmatpush1.msra.mxu0 %v769
        %977 = vmatprep.subr.mxu0 %v772
        %978 = vmatpush1.msra.mxu0 %v771
        %979 = vmatprep.subr.mxu0 %v774
        %980 = vmatpush1.msra.mxu0 %v773
        %981 = vmatprep.subr.mxu0 %v776
        %982 = vmatpush1.msra.mxu0 %v775
        %983 = vmatprep.subr.mxu0 %v778
        %984 = vmatpush1.msra.mxu0 %v777
        %985 = vmatprep.subr.mxu0 %v780
        %986 = vmatpush1.msra.mxu0 %v779
        %987 = vmatprep.subr.mxu0 %v782
        %988 = vmatpush1.msra.mxu0 %v781
        %989 = vmatprep.subr.mxu0 %v784
        %990 = vmatpush1.msra.mxu0 %v783
        %991 = vmatprep.subr.mxu0 %v786
        %992 = vmatpush1.msra.mxu0 %v785
        %993 = vmatprep.subr.mxu0 %v788
        %994 = vmatpush1.msra.mxu0 %v787
        %995 = vmatprep.subr.mxu0 %v790
        %996 = vmatpush1.msra.mxu0 %v789
        %997 = vmatprep.subr.mxu0 %v792
        %998 = vmatpush1.msra.mxu0 %v791
        %999 = vmatprep.mubr.f32.mxu0 %v638
        %1000 = vmatmul.mubr.f32.gmra.mrb[0].mxu0 %v636
        %v1001 = vpop.f32.mrb[0].mxu0
        %v1002 = vadd.f32 %v925, %v1001
        %v1003 = vpop.f32.mrb[0].mxu0
        %v1004 = vadd.f32 %v927, %v1003
        %1005 = vmatprep.mubr.f32.mxu0 %v644
        %1006 = vmatmul.mubr.f32.gmra.mrb[0].mxu0 %v642
        %v1007 = vpop.f32.mrb[0].mxu0
        %v1008 = vadd.f32 %v931, %v1007
        %v1009 = vpop.f32.mrb[0].mxu0
        %v1010 = vadd.f32 %v933, %v1009
        %1011 = vdwg.mxu0
        %s1012 = scalar_lea.vmem [#allocation2], 1024
        %v1013 = vld [vmem:[%s1012] sm:$0xff]
        %v1014 = vld [vmem:[%s1012 + $0x8] sm:$0xff]
        %v1015 = vld [vmem:[%s1012 + $0x10] sm:$0xff]
        %v1016 = vld [vmem:[%s1012 + $0x18] sm:$0xff]
        %v1017 = vld [vmem:[%s1012 + $0x20] sm:$0xff]
        %v1018 = vld [vmem:[%s1012 + $0x28] sm:$0xff]
        %v1019 = vld [vmem:[%s1012 + $0x30] sm:$0xff]
        %v1020 = vld [vmem:[%s1012 + $0x38] sm:$0xff]
        %v1021 = vld [vmem:[%s1012 + $0x40] sm:$0xff]
        %v1022 = vld [vmem:[%s1012 + $0x48] sm:$0xff]
        %v1023 = vld [vmem:[%s1012 + $0x50] sm:$0xff]
        %v1024 = vld [vmem:[%s1012 + $0x58] sm:$0xff]
        %v1025 = vld [vmem:[%s1012 + $0x60] sm:$0xff]
        %v1026 = vld [vmem:[%s1012 + $0x68] sm:$0xff]
        %v1027 = vld [vmem:[%s1012 + $0x70] sm:$0xff]
        %v1028 = vld [vmem:[%s1012 + $0x78] sm:$0xff]
        %v1029 = vld [vmem:[%s1012 + $0x80] sm:$0xff]
        %v1030 = vld [vmem:[%s1012 + $0x88] sm:$0xff]
        %v1031 = vld [vmem:[%s1012 + $0x90] sm:$0xff]
        %v1032 = vld [vmem:[%s1012 + $0x98] sm:$0xff]
        %v1033 = vld [vmem:[%s1012 + $0xa0] sm:$0xff]
        %v1034 = vld [vmem:[%s1012 + $0xa8] sm:$0xff]
        %v1035 = vld [vmem:[%s1012 + $0xb0] sm:$0xff]
        %v1036 = vld [vmem:[%s1012 + $0xb8] sm:$0xff]
        %v1037 = vld [vmem:[%s1012 + $0xc0] sm:$0xff]
        %v1038 = vld [vmem:[%s1012 + $0xc8] sm:$0xff]
        %v1039 = vld [vmem:[%s1012 + $0xd0] sm:$0xff]
        %v1040 = vld [vmem:[%s1012 + $0xd8] sm:$0xff]
        %v1041 = vld [vmem:[%s1012 + $0xe0] sm:$0xff]
        %v1042 = vld [vmem:[%s1012 + $0xe8] sm:$0xff]
        %v1043 = vld [vmem:[%s1012 + $0xf0] sm:$0xff]
        %v1044 = vld [vmem:[%s1012 + $0xf8] sm:$0xff]
        %v1045 = vld [vmem:[%s1012 + $0x100] sm:$0xff]
        %v1046 = vld [vmem:[%s1012 + $0x108] sm:$0xff]
        %v1047 = vld [vmem:[%s1012 + $0x110] sm:$0xff]
        %v1048 = vld [vmem:[%s1012 + $0x118] sm:$0xff]
        %v1049 = vld [vmem:[%s1012 + $0x120] sm:$0xff]
        %v1050 = vld [vmem:[%s1012 + $0x128] sm:$0xff]
        %v1051 = vld [vmem:[%s1012 + $0x130] sm:$0xff]
        %v1052 = vld [vmem:[%s1012 + $0x138] sm:$0xff]
        %v1053 = vld [vmem:[%s1012 + $0x140] sm:$0xff]
        %v1054 = vld [vmem:[%s1012 + $0x148] sm:$0xff]
        %v1055 = vld [vmem:[%s1012 + $0x150] sm:$0xff]
        %v1056 = vld [vmem:[%s1012 + $0x158] sm:$0xff]
        %v1057 = vld [vmem:[%s1012 + $0x160] sm:$0xff]
        %v1058 = vld [vmem:[%s1012 + $0x168] sm:$0xff]
        %v1059 = vld [vmem:[%s1012 + $0x170] sm:$0xff]
        %v1060 = vld [vmem:[%s1012 + $0x178] sm:$0xff]
        %v1061 = vld [vmem:[%s1012 + $0x180] sm:$0xff]
        %v1062 = vld [vmem:[%s1012 + $0x188] sm:$0xff]
        %v1063 = vld [vmem:[%s1012 + $0x190] sm:$0xff]
        %v1064 = vld [vmem:[%s1012 + $0x198] sm:$0xff]
        %v1065 = vld [vmem:[%s1012 + $0x1a0] sm:$0xff]
        %v1066 = vld [vmem:[%s1012 + $0x1a8] sm:$0xff]
        %v1067 = vld [vmem:[%s1012 + $0x1b0] sm:$0xff]
        %v1068 = vld [vmem:[%s1012 + $0x1b8] sm:$0xff]
        %v1069 = vld [vmem:[%s1012 + $0x1c0] sm:$0xff]
        %v1070 = vld [vmem:[%s1012 + $0x1c8] sm:$0xff]
        %v1071 = vld [vmem:[%s1012 + $0x1d0] sm:$0xff]
        %v1072 = vld [vmem:[%s1012 + $0x1d8] sm:$0xff]
        %v1073 = vld [vmem:[%s1012 + $0x1e0] sm:$0xff]
        %v1074 = vld [vmem:[%s1012 + $0x1e8] sm:$0xff]
        %v1075 = vld [vmem:[%s1012 + $0x1f0] sm:$0xff]
        %v1076 = vld [vmem:[%s1012 + $0x1f8] sm:$0xff]
        %1077 = vmatprep.subr.mxu0 %v1014
        %1078 = vmatpush1.msra.mxu0 %v1013
        %1079 = vmatprep.subr.mxu0 %v1016
        %1080 = vmatpush1.msra.mxu0 %v1015
        %1081 = vmatprep.subr.mxu0 %v1018
        %1082 = vmatpush1.msra.mxu0 %v1017
        %1083 = vmatprep.subr.mxu0 %v1020
        %1084 = vmatpush1.msra.mxu0 %v1019
        %1085 = vmatprep.subr.mxu0 %v1022
        %1086 = vmatpush1.msra.mxu0 %v1021
        %1087 = vmatprep.subr.mxu0 %v1024
        %1088 = vmatpush1.msra.mxu0 %v1023
        %1089 = vmatprep.subr.mxu0 %v1026
        %1090 = vmatpush1.msra.mxu0 %v1025
        %1091 = vmatprep.subr.mxu0 %v1028
        %1092 = vmatpush1.msra.mxu0 %v1027
        %1093 = vmatprep.subr.mxu0 %v1030
        %1094 = vmatpush1.msra.mxu0 %v1029
        %1095 = vmatprep.subr.mxu0 %v1032
        %1096 = vmatpush1.msra.mxu0 %v1031
        %1097 = vmatprep.subr.mxu0 %v1034
        %1098 = vmatpush1.msra.mxu0 %v1033
        %1099 = vmatprep.subr.mxu0 %v1036
        %1100 = vmatpush1.msra.mxu0 %v1035
        %1101 = vmatprep.subr.mxu0 %v1038
        %1102 = vmatpush1.msra.mxu0 %v1037
        %1103 = vmatprep.subr.mxu0 %v1040
        %1104 = vmatpush1.msra.mxu0 %v1039
        %1105 = vmatprep.subr.mxu0 %v1042
        %1106 = vmatpush1.msra.mxu0 %v1041
        %1107 = vmatprep.subr.mxu0 %v1044
        %1108 = vmatpush1.msra.mxu0 %v1043
        %1109 = vmatprep.subr.mxu0 %v1046
        %1110 = vmatpush1.msra.mxu0 %v1045
        %1111 = vmatprep.subr.mxu0 %v1048
        %1112 = vmatpush1.msra.mxu0 %v1047
        %1113 = vmatprep.subr.mxu0 %v1050
        %1114 = vmatpush1.msra.mxu0 %v1049
        %1115 = vmatprep.subr.mxu0 %v1052
        %1116 = vmatpush1.msra.mxu0 %v1051
        %1117 = vmatprep.subr.mxu0 %v1054
        %1118 = vmatpush1.msra.mxu0 %v1053
        %1119 = vmatprep.subr.mxu0 %v1056
        %1120 = vmatpush1.msra.mxu0 %v1055
        %1121 = vmatprep.subr.mxu0 %v1058
        %1122 = vmatpush1.msra.mxu0 %v1057
        %1123 = vmatprep.subr.mxu0 %v1060
        %1124 = vmatpush1.msra.mxu0 %v1059
        %1125 = vmatprep.subr.mxu0 %v1062
        %1126 = vmatpush1.msra.mxu0 %v1061
        %1127 = vmatprep.subr.mxu0 %v1064
        %1128 = vmatpush1.msra.mxu0 %v1063
        %1129 = vmatprep.subr.mxu0 %v1066
        %1130 = vmatpush1.msra.mxu0 %v1065
        %1131 = vmatprep.subr.mxu0 %v1068
        %1132 = vmatpush1.msra.mxu0 %v1067
        %1133 = vmatprep.subr.mxu0 %v1070
        %1134 = vmatpush1.msra.mxu0 %v1069
        %1135 = vmatprep.subr.mxu0 %v1072
        %1136 = vmatpush1.msra.mxu0 %v1071
        %1137 = vmatprep.subr.mxu0 %v1074
        %1138 = vmatpush1.msra.mxu0 %v1073
        %1139 = vmatprep.subr.mxu0 %v1076
        %1140 = vmatpush1.msra.mxu0 %v1075
        %1141 = vmatprep.mubr.f32.mxu0 %v721
        %1142 = vmatmul.mubr.f32.gmra.mrb[0].mxu0 %v719
        %v1143 = vpop.f32.mrb[0].mxu0
        %v1144 = vadd.f32 0.0, %v1143
        %v1145 = vpop.f32.mrb[0].mxu0
        %v1146 = vadd.f32 0.0, %v1145
        %1147 = vmatprep.mubr.f32.mxu0 %v727
        %1148 = vmatmul.mubr.f32.gmra.mrb[0].mxu0 %v725
        %v1149 = vpop.f32.mrb[0].mxu0
        %v1150 = vadd.f32 0.0, %v1149
        %v1151 = vpop.f32.mrb[0].mxu0
        %v1152 = vadd.f32 0.0, %v1151
        %1153 = vdwg.mxu0
        %v1154 = vadd.f32 %v1002, %v1144
        %v1155 = vadd.f32 %v1004, %v1146
        %v1156 = vadd.f32 %v1008, %v1150
        %v1157 = vadd.f32 %v1010, %v1152
        %v1158 = vld [vmem:[%s4] sm:$0x3]
        %v1160 = vlaneseq
        %v1161 = vshrl.u32 %v1160, 7
        %v1162 = vsub.s32 0, %v1161
        %v1163 = vrot.slane %v1158, %v1162
        %v1164 = vlaneseq
        %v1165 = vshrl.u32 %v1164, 7
        %v1166 = vsub.s32 1, %v1165
        %v1167 = vrot.slane %v1158, %v1166
        %v1170 = vadd.f32 %v1154, %v1163
        %v1171 = vadd.f32 %v1155, %v1167
        %v1172 = vadd.f32 %v1156, %v1163
        %v1173 = vadd.f32 %v1157, %v1167
        %v1174 = vmax.f32 %v1170, 0.0
        %v1175 = vmax.f32 %v1171, 0.0
        %v1176 = vmax.f32 %v1172, 0.0
        %v1177 = vmax.f32 %v1173, 0.0
        %1178 = vmatprep.subr.mxu0 %v1175
        %1179 = vmatpush1.msra.mxu0 %v1174
        %1180 = vmatprep.subr.mxu0 %v1177
        %1181 = vmatpush1.msra.mxu0 %v1176
        %1182 = vmatprep.subr.mxu0 0.0
        %1183 = vmatpush1.msra.mxu0 0.0
        %1184 = vmatprep.subr.mxu0 0.0
        %1185 = vmatpush1.msra.mxu0 0.0
        %1186 = vmatprep.subr.mxu0 0.0
        %1187 = vmatpush1.msra.mxu0 0.0
        %1188 = vmatprep.subr.mxu0 0.0
        %1189 = vmatpush1.msra.mxu0 0.0
        %1190 = vmatprep.subr.mxu0 0.0
        %1191 = vmatpush1.msra.mxu0 0.0
        %1192 = vmatprep.subr.mxu0 0.0
        %1193 = vmatpush1.msra.mxu0 0.0
        %1194 = vmatprep.subr.mxu0 0.0
        %1195 = vmatpush1.msra.mxu0 0.0
        %1196 = vmatprep.subr.mxu0 0.0
        %1197 = vmatpush1.msra.mxu0 0.0
        %1198 = vmatprep.subr.mxu0 0.0
        %1199 = vmatpush1.msra.mxu0 0.0
        %1200 = vmatprep.subr.mxu0 0.0
        %1201 = vmatpush1.msra.mxu0 0.0
        %1202 = vmatprep.subr.mxu0 0.0
        %1203 = vmatpush1.msra.mxu0 0.0
        %1204 = vmatprep.subr.mxu0 0.0
        %1205 = vmatpush1.msra.mxu0 0.0
        %1206 = vmatprep.subr.mxu0 0.0
        %1207 = vmatpush1.msra.mxu0 0.0
        %1208 = vmatprep.subr.mxu0 0.0
        %1209 = vmatpush1.msra.mxu0 0.0
        %1210 = vmatprep.subr.mxu0 0.0
        %1211 = vmatpush1.msra.mxu0 0.0
        %1212 = vmatprep.subr.mxu0 0.0
        %1213 = vmatpush1.msra.mxu0 0.0
        %1214 = vmatprep.subr.mxu0 0.0
        %1215 = vmatpush1.msra.mxu0 0.0
        %1216 = vmatprep.subr.mxu0 0.0
        %1217 = vmatpush1.msra.mxu0 0.0
        %1218 = vmatprep.subr.mxu0 0.0
        %1219 = vmatpush1.msra.mxu0 0.0
        %1220 = vmatprep.subr.mxu0 0.0
        %1221 = vmatpush1.msra.mxu0 0.0
        %1222 = vmatprep.subr.mxu0 0.0
        %1223 = vmatpush1.msra.mxu0 0.0
        %1224 = vmatprep.subr.mxu0 0.0
        %1225 = vmatpush1.msra.mxu0 0.0
        %1226 = vmatprep.subr.mxu0 0.0
        %1227 = vmatpush1.msra.mxu0 0.0
        %1228 = vmatprep.subr.mxu0 0.0
        %1229 = vmatpush1.msra.mxu0 0.0
        %1230 = vmatprep.subr.mxu0 0.0
        %1231 = vmatpush1.msra.mxu0 0.0
        %1232 = vmatprep.subr.mxu0 0.0
        %1233 = vmatpush1.msra.mxu0 0.0
        %1234 = vmatprep.subr.mxu0 0.0
        %1235 = vmatpush1.msra.mxu0 0.0
        %1236 = vmatprep.subr.mxu0 0.0
        %1237 = vmatpush1.msra.mxu0 0.0
        %1238 = vmatprep.subr.mxu0 0.0
        %1239 = vmatpush1.msra.mxu0 0.0
        %1240 = vmatprep.subr.mxu0 0.0
        %1241 = vmatpush1.msra.mxu0 0.0
        %1242 = vmatprep.mubr.f32.mxu0 0.0
        %1243 = vmatmul.mubr.f32.gmra.mrb[0].mxu0 %v564
        %v1244 = vpop.f32.mrb[0].mxu0
        %v1245 = vadd.f32 0.0, %v1244
        %v1246 = vpop.f32.mrb[0].mxu0
        %v1247 = vadd.f32 0.0, %v1246
        %1248 = vmatprep.mubr.f32.mxu0 0.0
        %1249 = vmatmul.mubr.f32.gmra.mrb[0].mxu0 %v567
        %v1250 = vpop.f32.mrb[0].mxu0
        %v1251 = vadd.f32 0.0, %v1250
        %v1252 = vpop.f32.mrb[0].mxu0
        %v1253 = vadd.f32 0.0, %v1252
        %1254 = vdwg.mxu0
        %1255 = vmatprep.subr.mxu0 %v1175
        %1256 = vmatpush1.msra.mxu0 %v1174
        %1257 = vmatprep.subr.mxu0 %v1177
        %1258 = vmatpush1.msra.mxu0 %v1176
        %1259 = vmatprep.subr.mxu0 0.0
        %1260 = vmatpush1.msra.mxu0 0.0
        %1261 = vmatprep.subr.mxu0 0.0
        %1262 = vmatpush1.msra.mxu0 0.0
        %1263 = vmatprep.subr.mxu0 0.0
        %1264 = vmatpush1.msra.mxu0 0.0
        %1265 = vmatprep.subr.mxu0 0.0
        %1266 = vmatpush1.msra.mxu0 0.0
        %1267 = vmatprep.subr.mxu0 0.0
        %1268 = vmatpush1.msra.mxu0 0.0
        %1269 = vmatprep.subr.mxu0 0.0
        %1270 = vmatpush1.msra.mxu0 0.0
        %1271 = vmatprep.subr.mxu0 0.0
        %1272 = vmatpush1.msra.mxu0 0.0
        %1273 = vmatprep.subr.mxu0 0.0
        %1274 = vmatpush1.msra.mxu0 0.0
        %1275 = vmatprep.subr.mxu0 0.0
        %1276 = vmatpush1.msra.mxu0 0.0
        %1277 = vmatprep.subr.mxu0 0.0
        %1278 = vmatpush1.msra.mxu0 0.0
        %1279 = vmatprep.subr.mxu0 0.0
        %1280 = vmatpush1.msra.mxu0 0.0
        %1281 = vmatprep.subr.mxu0 0.0
        %1282 = vmatpush1.msra.mxu0 0.0
        %1283 = vmatprep.subr.mxu0 0.0
        %1284 = vmatpush1.msra.mxu0 0.0
        %1285 = vmatprep.subr.mxu0 0.0
        %1286 = vmatpush1.msra.mxu0 0.0
        %1287 = vmatprep.subr.mxu0 0.0
        %1288 = vmatpush1.msra.mxu0 0.0
        %1289 = vmatprep.subr.mxu0 0.0
        %1290 = vmatpush1.msra.mxu0 0.0
        %1291 = vmatprep.subr.mxu0 0.0
        %1292 = vmatpush1.msra.mxu0 0.0
        %1293 = vmatprep.subr.mxu0 0.0
        %1294 = vmatpush1.msra.mxu0 0.0
        %1295 = vmatprep.subr.mxu0 0.0
        %1296 = vmatpush1.msra.mxu0 0.0
        %1297 = vmatprep.subr.mxu0 0.0
        %1298 = vmatpush1.msra.mxu0 0.0
        %1299 = vmatprep.subr.mxu0 0.0
        %1300 = vmatpush1.msra.mxu0 0.0
        %1301 = vmatprep.subr.mxu0 0.0
        %1302 = vmatpush1.msra.mxu0 0.0
        %1303 = vmatprep.subr.mxu0 0.0
        %1304 = vmatpush1.msra.mxu0 0.0
        %1305 = vmatprep.subr.mxu0 0.0
        %1306 = vmatpush1.msra.mxu0 0.0
        %1307 = vmatprep.subr.mxu0 0.0
        %1308 = vmatpush1.msra.mxu0 0.0
        %1309 = vmatprep.subr.mxu0 0.0
        %1310 = vmatpush1.msra.mxu0 0.0
        %1311 = vmatprep.subr.mxu0 0.0
        %1312 = vmatpush1.msra.mxu0 0.0
        %1313 = vmatprep.subr.mxu0 0.0
        %1314 = vmatpush1.msra.mxu0 0.0
        %1315 = vmatprep.subr.mxu0 0.0
        %1316 = vmatpush1.msra.mxu0 0.0
        %1317 = vmatprep.subr.mxu0 0.0
        %1318 = vmatpush1.msra.mxu0 0.0
        %1319 = vmatprep.mubr.f32.mxu0 0.0
        %1320 = vmatmul.mubr.f32.gmra.mrb[0].mxu0 %v647
        %v1321 = vpop.f32.mrb[0].mxu0
        %v1322 = vadd.f32 0.0, %v1321
        %v1323 = vpop.f32.mrb[0].mxu0
        %v1324 = vadd.f32 0.0, %v1323
        %1325 = vmatprep.mubr.f32.mxu0 0.0
        %1326 = vmatmul.mubr.f32.gmra.mrb[0].mxu0 %v650
        %v1327 = vpop.f32.mrb[0].mxu0
        %v1328 = vadd.f32 0.0, %v1327
        %v1329 = vpop.f32.mrb[0].mxu0
        %v1330 = vadd.f32 0.0, %v1329
        %1331 = vdwg.mxu0
        %v1332 = vld [vmem:[#allocation5] sm:$0xff]
        %v1333 = vld [vmem:[#allocation5 + $0x8] sm:$0xff]
        %v1334 = vld [vmem:[#allocation5 + $0x10] sm:$0xff]
        %v1335 = vld [vmem:[#allocation5 + $0x18] sm:$0xff]
        %v1336 = vld [vmem:[#allocation5 + $0x20] sm:$0xff]
        %v1337 = vld [vmem:[#allocation5 + $0x28] sm:$0xff]
        %v1338 = vld [vmem:[#allocation5 + $0x30] sm:$0xff]
        %v1339 = vld [vmem:[#allocation5 + $0x38] sm:$0xff]
        %v1340 = vld [vmem:[#allocation5 + $0x40] sm:$0xff]
        %v1341 = vld [vmem:[#allocation5 + $0x48] sm:$0xff]
        %v1342 = vld [vmem:[#allocation5 + $0x50] sm:$0xff]
        %v1343 = vld [vmem:[#allocation5 + $0x58] sm:$0xff]
        %v1344 = vld [vmem:[#allocation5 + $0x60] sm:$0xff]
        %v1345 = vld [vmem:[#allocation5 + $0x68] sm:$0xff]
        %v1346 = vld [vmem:[#allocation5 + $0x70] sm:$0xff]
        %v1347 = vld [vmem:[#allocation5 + $0x78] sm:$0xff]
        %v1348 = vld [vmem:[#allocation5 + $0x80] sm:$0xff]
        %v1349 = vld [vmem:[#allocation5 + $0x88] sm:$0xff]
        %v1350 = vld [vmem:[#allocation5 + $0x90] sm:$0xff]
        %v1351 = vld [vmem:[#allocation5 + $0x98] sm:$0xff]
        %v1352 = vld [vmem:[#allocation5 + $0xa0] sm:$0xff]
        %v1353 = vld [vmem:[#allocation5 + $0xa8] sm:$0xff]
        %v1354 = vld [vmem:[#allocation5 + $0xb0] sm:$0xff]
        %v1355 = vld [vmem:[#allocation5 + $0xb8] sm:$0xff]
        %v1356 = vld [vmem:[#allocation5 + $0xc0] sm:$0xff]
        %v1357 = vld [vmem:[#allocation5 + $0xc8] sm:$0xff]
        %v1358 = vld [vmem:[#allocation5 + $0xd0] sm:$0xff]
        %v1359 = vld [vmem:[#allocation5 + $0xd8] sm:$0xff]
        %v1360 = vld [vmem:[#allocation5 + $0xe0] sm:$0xff]
        %v1361 = vld [vmem:[#allocation5 + $0xe8] sm:$0xff]
        %v1362 = vld [vmem:[#allocation5 + $0xf0] sm:$0xff]
        %v1363 = vld [vmem:[#allocation5 + $0xf8] sm:$0xff]
        %s1364 = scalar_lea.vmem [#allocation5], 256
        %v1365 = vld [vmem:[%s1364] sm:$0xff]
        %v1366 = vld [vmem:[%s1364 + $0x8] sm:$0xff]
        %v1367 = vld [vmem:[%s1364 + $0x10] sm:$0xff]
        %v1368 = vld [vmem:[%s1364 + $0x18] sm:$0xff]
        %v1369 = vld [vmem:[%s1364 + $0x20] sm:$0xff]
        %v1370 = vld [vmem:[%s1364 + $0x28] sm:$0xff]
        %v1371 = vld [vmem:[%s1364 + $0x30] sm:$0xff]
        %v1372 = vld [vmem:[%s1364 + $0x38] sm:$0xff]
        %v1373 = vld [vmem:[%s1364 + $0x40] sm:$0xff]
        %v1374 = vld [vmem:[%s1364 + $0x48] sm:$0xff]
        %v1375 = vld [vmem:[%s1364 + $0x50] sm:$0xff]
        %v1376 = vld [vmem:[%s1364 + $0x58] sm:$0xff]
        %v1377 = vld [vmem:[%s1364 + $0x60] sm:$0xff]
        %v1378 = vld [vmem:[%s1364 + $0x68] sm:$0xff]
        %v1379 = vld [vmem:[%s1364 + $0x70] sm:$0xff]
        %v1380 = vld [vmem:[%s1364 + $0x78] sm:$0xff]
        %v1381 = vld [vmem:[%s1364 + $0x80] sm:$0xff]
        %v1382 = vld [vmem:[%s1364 + $0x88] sm:$0xff]
        %v1383 = vld [vmem:[%s1364 + $0x90] sm:$0xff]
        %v1384 = vld [vmem:[%s1364 + $0x98] sm:$0xff]
        %v1385 = vld [vmem:[%s1364 + $0xa0] sm:$0xff]
        %v1386 = vld [vmem:[%s1364 + $0xa8] sm:$0xff]
        %v1387 = vld [vmem:[%s1364 + $0xb0] sm:$0xff]
        %v1388 = vld [vmem:[%s1364 + $0xb8] sm:$0xff]
        %v1389 = vld [vmem:[%s1364 + $0xc0] sm:$0xff]
        %v1390 = vld [vmem:[%s1364 + $0xc8] sm:$0xff]
        %v1391 = vld [vmem:[%s1364 + $0xd0] sm:$0xff]
        %v1392 = vld [vmem:[%s1364 + $0xd8] sm:$0xff]
        %v1393 = vld [vmem:[%s1364 + $0xe0] sm:$0xff]
        %v1394 = vld [vmem:[%s1364 + $0xe8] sm:$0xff]
        %v1395 = vld [vmem:[%s1364 + $0xf0] sm:$0xff]
        %v1396 = vld [vmem:[%s1364 + $0xf8] sm:$0xff]
        %1397 = vmatprep.subr.mxu0 0.0
        %1398 = vmatpush1.msra.mxu0 %v1365
        %1399 = vmatprep.subr.mxu0 0.0
        %1400 = vmatpush1.msra.mxu0 %v1366
        %1401 = vmatprep.subr.mxu0 0.0
        %1402 = vmatpush1.msra.mxu0 %v1367
        %1403 = vmatprep.subr.mxu0 0.0
        %1404 = vmatpush1.msra.mxu0 %v1368
        %1405 = vmatprep.subr.mxu0 0.0
        %1406 = vmatpush1.msra.mxu0 %v1369
        %1407 = vmatprep.subr.mxu0 0.0
        %1408 = vmatpush1.msra.mxu0 %v1370
        %1409 = vmatprep.subr.mxu0 0.0
        %1410 = vmatpush1.msra.mxu0 %v1371
        %1411 = vmatprep.subr.mxu0 0.0
        %1412 = vmatpush1.msra.mxu0 %v1372
        %1413 = vmatprep.subr.mxu0 0.0
        %1414 = vmatpush1.msra.mxu0 %v1373
        %1415 = vmatprep.subr.mxu0 0.0
        %1416 = vmatpush1.msra.mxu0 %v1374
        %1417 = vmatprep.subr.mxu0 0.0
        %1418 = vmatpush1.msra.mxu0 %v1375
        %1419 = vmatprep.subr.mxu0 0.0
        %1420 = vmatpush1.msra.mxu0 %v1376
        %1421 = vmatprep.subr.mxu0 0.0
        %1422 = vmatpush1.msra.mxu0 %v1377
        %1423 = vmatprep.subr.mxu0 0.0
        %1424 = vmatpush1.msra.mxu0 %v1378
        %1425 = vmatprep.subr.mxu0 0.0
        %1426 = vmatpush1.msra.mxu0 %v1379
        %1427 = vmatprep.subr.mxu0 0.0
        %1428 = vmatpush1.msra.mxu0 %v1380
        %1429 = vmatprep.subr.mxu0 0.0
        %1430 = vmatpush1.msra.mxu0 %v1381
        %1431 = vmatprep.subr.mxu0 0.0
        %1432 = vmatpush1.msra.mxu0 %v1382
        %1433 = vmatprep.subr.mxu0 0.0
        %1434 = vmatpush1.msra.mxu0 %v1383
        %1435 = vmatprep.subr.mxu0 0.0
        %1436 = vmatpush1.msra.mxu0 %v1384
        %1437 = vmatprep.subr.mxu0 0.0
        %1438 = vmatpush1.msra.mxu0 %v1385
        %1439 = vmatprep.subr.mxu0 0.0
        %1440 = vmatpush1.msra.mxu0 %v1386
        %1441 = vmatprep.subr.mxu0 0.0
        %1442 = vmatpush1.msra.mxu0 %v1387
        %1443 = vmatprep.subr.mxu0 0.0
        %1444 = vmatpush1.msra.mxu0 %v1388
        %1445 = vmatprep.subr.mxu0 0.0
        %1446 = vmatpush1.msra.mxu0 %v1389
        %1447 = vmatprep.subr.mxu0 0.0
        %1448 = vmatpush1.msra.mxu0 %v1390
        %1449 = vmatprep.subr.mxu0 0.0
        %1450 = vmatpush1.msra.mxu0 %v1391
        %1451 = vmatprep.subr.mxu0 0.0
        %1452 = vmatpush1.msra.mxu0 %v1392
        %1453 = vmatprep.subr.mxu0 0.0
        %1454 = vmatpush1.msra.mxu0 %v1393
        %1455 = vmatprep.subr.mxu0 0.0
        %1456 = vmatpush1.msra.mxu0 %v1394
        %1457 = vmatprep.subr.mxu0 0.0
        %1458 = vmatpush1.msra.mxu0 %v1395
        %1459 = vmatprep.subr.mxu0 0.0
        %1460 = vmatpush1.msra.mxu0 %v1396
        %1461 = vmatprep.mubr.f32.mxu0 %v1175
        %1462 = vmatmul.mubr.f32.gmra.mrb[0].mxu0 %v1174
        %v1463 = vpop.f32.mrb[0].mxu0
        %v1464 = vadd.f32 0.0, %v1463
        %v1465 = vpop.f32.mrb[0].mxu0
        %1466 = vmatprep.mubr.f32.mxu0 %v1177
        %1467 = vmatmul.mubr.f32.gmra.mrb[0].mxu0 %v1176
        %v1468 = vpop.f32.mrb[0].mxu0
        %v1469 = vadd.f32 0.0, %v1468
        %v1470 = vpop.f32.mrb[0].mxu0
        %1471 = vdwg.mxu0
        %1472 = vmatprep.subr.mxu0 0.0
        %1473 = vmatpush1.msra.mxu0 %v1332
        %1474 = vmatprep.subr.mxu0 0.0
        %1475 = vmatpush1.msra.mxu0 %v1333
        %1476 = vmatprep.subr.mxu0 0.0
        %1477 = vmatpush1.msra.mxu0 %v1334
        %1478 = vmatprep.subr.mxu0 0.0
        %1479 = vmatpush1.msra.mxu0 %v1335
        %1480 = vmatprep.subr.mxu0 0.0
        %1481 = vmatpush1.msra.mxu0 %v1336
        %1482 = vmatprep.subr.mxu0 0.0
        %1483 = vmatpush1.msra.mxu0 %v1337
        %1484 = vmatprep.subr.mxu0 0.0
        %1485 = vmatpush1.msra.mxu0 %v1338
        %1486 = vmatprep.subr.mxu0 0.0
        %1487 = vmatpush1.msra.mxu0 %v1339
        %1488 = vmatprep.subr.mxu0 0.0
        %1489 = vmatpush1.msra.mxu0 %v1340
        %1490 = vmatprep.subr.mxu0 0.0
        %1491 = vmatpush1.msra.mxu0 %v1341
        %1492 = vmatprep.subr.mxu0 0.0
        %1493 = vmatpush1.msra.mxu0 %v1342
        %1494 = vmatprep.subr.mxu0 0.0
        %1495 = vmatpush1.msra.mxu0 %v1343
        %1496 = vmatprep.subr.mxu0 0.0
        %1497 = vmatpush1.msra.mxu0 %v1344
        %1498 = vmatprep.subr.mxu0 0.0
        %1499 = vmatpush1.msra.mxu0 %v1345
        %1500 = vmatprep.subr.mxu0 0.0
        %1501 = vmatpush1.msra.mxu0 %v1346
        %1502 = vmatprep.subr.mxu0 0.0
        %1503 = vmatpush1.msra.mxu0 %v1347
        %1504 = vmatprep.subr.mxu0 0.0
        %1505 = vmatpush1.msra.mxu0 %v1348
        %1506 = vmatprep.subr.mxu0 0.0
        %1507 = vmatpush1.msra.mxu0 %v1349
        %1508 = vmatprep.subr.mxu0 0.0
        %1509 = vmatpush1.msra.mxu0 %v1350
        %1510 = vmatprep.subr.mxu0 0.0
        %1511 = vmatpush1.msra.mxu0 %v1351
        %1512 = vmatprep.subr.mxu0 0.0
        %1513 = vmatpush1.msra.mxu0 %v1352
        %1514 = vmatprep.subr.mxu0 0.0
        %1515 = vmatpush1.msra.mxu0 %v1353
        %1516 = vmatprep.subr.mxu0 0.0
        %1517 = vmatpush1.msra.mxu0 %v1354
        %1518 = vmatprep.subr.mxu0 0.0
        %1519 = vmatpush1.msra.mxu0 %v1355
        %1520 = vmatprep.subr.mxu0 0.0
        %1521 = vmatpush1.msra.mxu0 %v1356
        %1522 = vmatprep.subr.mxu0 0.0
        %1523 = vmatpush1.msra.mxu0 %v1357
        %1524 = vmatprep.subr.mxu0 0.0
        %1525 = vmatpush1.msra.mxu0 %v1358
        %1526 = vmatprep.subr.mxu0 0.0
        %1527 = vmatpush1.msra.mxu0 %v1359
        %1528 = vmatprep.subr.mxu0 0.0
        %1529 = vmatpush1.msra.mxu0 %v1360
        %1530 = vmatprep.subr.mxu0 0.0
        %1531 = vmatpush1.msra.mxu0 %v1361
        %1532 = vmatprep.subr.mxu0 0.0
        %1533 = vmatpush1.msra.mxu0 %v1362
        %1534 = vmatprep.subr.mxu0 0.0
        %1535 = vmatpush1.msra.mxu0 %v1363
        %1536 = vmatprep.mubr.f32.mxu0 %v1247
        %1537 = vmatmul.mubr.f32.gmra.mrb[0].mxu0 %v1245
        %v1538 = vpop.f32.mrb[0].mxu0
        %v1539 = vadd.f32 %v1464, %v1538
        %v1540 = vpop.f32.mrb[0].mxu0
        %1541 = vmatprep.mubr.f32.mxu0 %v1253
        %1542 = vmatmul.mubr.f32.gmra.mrb[0].mxu0 %v1251
        %v1543 = vpop.f32.mrb[0].mxu0
        %v1544 = vadd.f32 %v1469, %v1543
        %v1545 = vpop.f32.mrb[0].mxu0
        %1546 = vdwg.mxu0
        %s1547 = scalar_lea.vmem [#allocation5], 512
        %v1548 = vld [vmem:[%s1547] sm:$0xff]
        %v1549 = vld [vmem:[%s1547 + $0x8] sm:$0xff]
        %v1550 = vld [vmem:[%s1547 + $0x10] sm:$0xff]
        %v1551 = vld [vmem:[%s1547 + $0x18] sm:$0xff]
        %v1552 = vld [vmem:[%s1547 + $0x20] sm:$0xff]
        %v1553 = vld [vmem:[%s1547 + $0x28] sm:$0xff]
        %v1554 = vld [vmem:[%s1547 + $0x30] sm:$0xff]
        %v1555 = vld [vmem:[%s1547 + $0x38] sm:$0xff]
        %v1556 = vld [vmem:[%s1547 + $0x40] sm:$0xff]
        %v1557 = vld [vmem:[%s1547 + $0x48] sm:$0xff]
        %v1558 = vld [vmem:[%s1547 + $0x50] sm:$0xff]
        %v1559 = vld [vmem:[%s1547 + $0x58] sm:$0xff]
        %v1560 = vld [vmem:[%s1547 + $0x60] sm:$0xff]
        %v1561 = vld [vmem:[%s1547 + $0x68] sm:$0xff]
        %v1562 = vld [vmem:[%s1547 + $0x70] sm:$0xff]
        %v1563 = vld [vmem:[%s1547 + $0x78] sm:$0xff]
        %v1564 = vld [vmem:[%s1547 + $0x80] sm:$0xff]
        %v1565 = vld [vmem:[%s1547 + $0x88] sm:$0xff]
        %v1566 = vld [vmem:[%s1547 + $0x90] sm:$0xff]
        %v1567 = vld [vmem:[%s1547 + $0x98] sm:$0xff]
        %v1568 = vld [vmem:[%s1547 + $0xa0] sm:$0xff]
        %v1569 = vld [vmem:[%s1547 + $0xa8] sm:$0xff]
        %v1570 = vld [vmem:[%s1547 + $0xb0] sm:$0xff]
        %v1571 = vld [vmem:[%s1547 + $0xb8] sm:$0xff]
        %v1572 = vld [vmem:[%s1547 + $0xc0] sm:$0xff]
        %v1573 = vld [vmem:[%s1547 + $0xc8] sm:$0xff]
        %v1574 = vld [vmem:[%s1547 + $0xd0] sm:$0xff]
        %v1575 = vld [vmem:[%s1547 + $0xd8] sm:$0xff]
        %v1576 = vld [vmem:[%s1547 + $0xe0] sm:$0xff]
        %v1577 = vld [vmem:[%s1547 + $0xe8] sm:$0xff]
        %v1578 = vld [vmem:[%s1547 + $0xf0] sm:$0xff]
        %v1579 = vld [vmem:[%s1547 + $0xf8] sm:$0xff]
        %1580 = vmatprep.subr.mxu0 0.0
        %1581 = vmatpush1.msra.mxu0 %v1548
        %1582 = vmatprep.subr.mxu0 0.0
        %1583 = vmatpush1.msra.mxu0 %v1549
        %1584 = vmatprep.subr.mxu0 0.0
        %1585 = vmatpush1.msra.mxu0 %v1550
        %1586 = vmatprep.subr.mxu0 0.0
        %1587 = vmatpush1.msra.mxu0 %v1551
        %1588 = vmatprep.subr.mxu0 0.0
        %1589 = vmatpush1.msra.mxu0 %v1552
        %1590 = vmatprep.subr.mxu0 0.0
        %1591 = vmatpush1.msra.mxu0 %v1553
        %1592 = vmatprep.subr.mxu0 0.0
        %1593 = vmatpush1.msra.mxu0 %v1554
        %1594 = vmatprep.subr.mxu0 0.0
        %1595 = vmatpush1.msra.mxu0 %v1555
        %1596 = vmatprep.subr.mxu0 0.0
        %1597 = vmatpush1.msra.mxu0 %v1556
        %1598 = vmatprep.subr.mxu0 0.0
        %1599 = vmatpush1.msra.mxu0 %v1557
        %1600 = vmatprep.subr.mxu0 0.0
        %1601 = vmatpush1.msra.mxu0 %v1558
        %1602 = vmatprep.subr.mxu0 0.0
        %1603 = vmatpush1.msra.mxu0 %v1559
        %1604 = vmatprep.subr.mxu0 0.0
        %1605 = vmatpush1.msra.mxu0 %v1560
        %1606 = vmatprep.subr.mxu0 0.0
        %1607 = vmatpush1.msra.mxu0 %v1561
        %1608 = vmatprep.subr.mxu0 0.0
        %1609 = vmatpush1.msra.mxu0 %v1562
        %1610 = vmatprep.subr.mxu0 0.0
        %1611 = vmatpush1.msra.mxu0 %v1563
        %1612 = vmatprep.subr.mxu0 0.0
        %1613 = vmatpush1.msra.mxu0 %v1564
        %1614 = vmatprep.subr.mxu0 0.0
        %1615 = vmatpush1.msra.mxu0 %v1565
        %1616 = vmatprep.subr.mxu0 0.0
        %1617 = vmatpush1.msra.mxu0 %v1566
        %1618 = vmatprep.subr.mxu0 0.0
        %1619 = vmatpush1.msra.mxu0 %v1567
        %1620 = vmatprep.subr.mxu0 0.0
        %1621 = vmatpush1.msra.mxu0 %v1568
        %1622 = vmatprep.subr.mxu0 0.0
        %1623 = vmatpush1.msra.mxu0 %v1569
        %1624 = vmatprep.subr.mxu0 0.0
        %1625 = vmatpush1.msra.mxu0 %v1570
        %1626 = vmatprep.subr.mxu0 0.0
        %1627 = vmatpush1.msra.mxu0 %v1571
        %1628 = vmatprep.subr.mxu0 0.0
        %1629 = vmatpush1.msra.mxu0 %v1572
        %1630 = vmatprep.subr.mxu0 0.0
        %1631 = vmatpush1.msra.mxu0 %v1573
        %1632 = vmatprep.subr.mxu0 0.0
        %1633 = vmatpush1.msra.mxu0 %v1574
        %1634 = vmatprep.subr.mxu0 0.0
        %1635 = vmatpush1.msra.mxu0 %v1575
        %1636 = vmatprep.subr.mxu0 0.0
        %1637 = vmatpush1.msra.mxu0 %v1576
        %1638 = vmatprep.subr.mxu0 0.0
        %1639 = vmatpush1.msra.mxu0 %v1577
        %1640 = vmatprep.subr.mxu0 0.0
        %1641 = vmatpush1.msra.mxu0 %v1578
        %1642 = vmatprep.subr.mxu0 0.0
        %1643 = vmatpush1.msra.mxu0 %v1579
        %1644 = vmatprep.mubr.f32.mxu0 %v1324
        %1645 = vmatmul.mubr.f32.gmra.mrb[0].mxu0 %v1322
        %v1646 = vpop.f32.mrb[0].mxu0
        %v1647 = vadd.f32 0.0, %v1646
        %v1648 = vpop.f32.mrb[0].mxu0
        %1649 = vmatprep.mubr.f32.mxu0 %v1330
        %1650 = vmatmul.mubr.f32.gmra.mrb[0].mxu0 %v1328
        %v1651 = vpop.f32.mrb[0].mxu0
        %v1652 = vadd.f32 0.0, %v1651
        %v1653 = vpop.f32.mrb[0].mxu0
        %1654 = vdwg.mxu0
        %v1655 = vadd.f32 %v1539, %v1647
        %v1656 = vadd.f32 %v1544, %v1652
        %v1657 = vld [vmem:[%s6] sm:$0x1]
        %v1659 = vlaneseq
        %v1660 = vshrl.u32 %v1659, 7
        %v1661 = vsub.s32 0, %v1660
        %v1662 = vrot.slane %v1657, %v1661
        %v1664 = vadd.f32 %v1655, %v1662
        %v1665 = vadd.f32 %v1656, %v1662
        %v1666 = vmax.f32 %v1664, 0.0
        %v1667 = vmax.f32 %v1665, 0.0
        %1668 = vst [vmem:[%s301] sm:$0xff] %v1666
        %1669 = vst [vmem:[%s301 + $0x8] sm:$0xff] %v1667
        %s1670 = sand.u32 %s183, 1
        %s1671 = scalar_lea.sflag [#allocation4], %s1670
        %s1672 = sand.u32 %s183, 1
        %s1673 = smul.addr %s1672, 16
        %s1674 = scalar_lea.vmem [#allocation7], %s1673
        // Predicated region
        $region57: #{tpu_custom_call.1} parent=47 // pred_check
          %p1675 = pneg %p193
        $region58: #{tpu_custom_call.1} parent=47 // pred_check_branch
          %1677 = sbr.rel (%p1675) target = $region60
        $region59: #{tpu_custom_call.1} parent=47 // pred_region
          %s1679 = ssub.s32 256, 256
          %1680 = vsyncadd %s1671, %s1679
          %s1681 = smul.addr %s23, 2
          %s1682 = smul.addr %s1681, 128
          %s1683 = scalar_lea.hbm %s7, %s1682
          %s1684 = sshll.u32 %s1674, 4
          %s1685 = int_to_ptr.vmem [resolvable:$true] %s1684
          %1690 = dma.vmem_to_hbm [thread:$0]  %s1685, 256, %s1683, %s1671, 128, 128, 8
        $region60: #{tpu_custom_call.1} parent=47 // pred_fallthru
          _
      $region48: #{tpu_custom_call.1} parent=5 // pred_fallthru
        _
      %p1691 = scmp.le.s32.totalorder 2, %s18
      // Predicated region
      $region61: #{tpu_custom_call.1} parent=5 // pred_check
        %p1692 = pneg %p1691
      $region62: #{tpu_custom_call.1} parent=5 // pred_check_branch
        %1694 = sbr.rel (%p1692) target = $region64
      $region63: #{tpu_custom_call.1} parent=5 // pred_region
        %s1695 = ssub.s32 %s18, 2
        // Predicated region
        $region65: #{tpu_custom_call.1} parent=63 // pred_check
          %p1696 = pneg %p199
        $region66: #{tpu_custom_call.1} parent=63 // pred_check_branch
          %1698 = sbr.rel (%p1696) target = $region68
        $region67: #{tpu_custom_call.1} parent=63 // pred_region
          %s1699 = sand.u32 %s184, 1
          %s1700 = scalar_lea.sflag [#allocation4], %s1699
          %s1701 = sand.u32 %s184, 1
          %s1702 = smul.addr %s1701, 16
          %s1703 = scalar_lea.vmem [#allocation7], %s1702
          %1704 = dma.done %s1700, 256
        $region68: #{tpu_custom_call.1} parent=63 // pred_fallthru
          _
      $region64: #{tpu_custom_call.1} parent=5 // pred_fallthru
        _
    $region6: #{tpu_custom_call.1} parent=1 // loop_footer
      %s22 = sadd.s32 1, %s18
    $region7: #{tpu_custom_call.1} parent=1 // loop_footer_branch
      %17 = sbr.rel target = $region3
    $region8: #{tpu_custom_call.1} parent=1 // loop_exit
      _
    %1705 = vsyncpa [#allocation3], 1
    %s1706 = scalar_lea.sflag [#allocation3], 1
    %1707 = vsyncpa %s1706, 1
    %1708 = vsyncpa [#allocation6], 1
    %1709 = vsyncpa [#allocation4], 1
    %s1710 = scalar_lea.sflag [#allocation4], 1
    %1711 = vsyncpa %s1710, 1

</llo_original>
